<compile_context>
chip_gen: v6e
topology: v6e:2x2x1
jax: 0.10.0
libtpu: 0.0.40
codegen_flags: <defaults>
</compile_context>

<pallas_src>
import numpy as np
import jax
import jax.numpy as jnp
from jax import lax
from jax.experimental import pallas as pl
from jax.experimental.pallas import tpu as pltpu

START_TAG = "<START>"
STOP_TAG = "<STOP>"


# ----------------------------- Pallas kernel ------------------------------- #

def make_bilstm_crf_kernel(T, E, H, S, start_ix):
    """Build the fused BiLSTM + hidden2tag + Viterbi-forward kernel.

    Inputs (all f32):
      embcat : (T, 2E)   row t = [emb[t] | emb[T-1-t]]
      wx     : (2E, 8H)  block-diagonal input weights, lane layout [i_f,i_b,f_f,f_b,o_f,o_b,g_f,g_b]
      wh     : (2H, 8H)  block-diagonal hidden weights (rows 0:H feed fwd lanes, H:2H feed bwd lanes)
      b      : (1, 8H)   b_ih + b_hh, same lane layout
      h0, c0 : (1, 2H)   [fwd | bwd] initial states
      wtag   : (2H, S)   hidden2tag weight (transposed)
      btag   : (1, S)
      transT : (S, S)    transT[j, i] = transitions[i, j]  (torch convention: TO i FROM j)
      stop   : (1, S)    transitions[STOP_TAG] row
    Outputs:
      feats  : (T, S) f32, bptrs : (T, S) int32, term : (1, S) f32
    """
    f32 = jnp.float32
    H2, H4, H6, H8 = 2 * H, 4 * H, 6 * H, 8 * H

    def kernel(embcat_ref, wx_ref, wh_ref, b_ref, h0_ref, c0_ref,
               wtag_ref, btag_ref, transT_ref, stop_ref,
               feats_ref, bptrs_ref, term_ref):
        # ---- hoisted input projection: one (T,2E)@(2E,8H) matmul, bias folded in ----
        xcomb = (jnp.dot(embcat_ref[...], wx_ref[...], preferred_element_type=f32)
                 + b_ref[...])                                          # (T, 8H)

        # ---- loop-invariant loads hoisted out of the recurrences ----
        wh = wh_ref[...]                                                # (2H, 8H)
        h = h0_ref[...]                                                 # (1, 2H) = [h_f | h_b]
        c = c0_ref[...]                                                 # (1, 2H) = [c_f | c_b]

        # ---- fused bidirectional LSTM recurrence: ONE MXU dot per step, fully unrolled ----
        hs = []
        for t in range(T):  # static T, full unroll (defer all stores, max LLO visibility)
            pre = xcomb[t:t + 1, :] + jnp.dot(h, wh, preferred_element_type=f32)  # (1, 8H)
            sig = jax.nn.sigmoid(pre[:, 0:H6])          # [i_f,i_b,f_f,f_b,o_f,o_b]
            gi = sig[:, 0:H2]
            gf = sig[:, H2:H4]
            go = sig[:, H4:H6]
            gg = jnp.tanh(pre[:, H6:H8])                # [g_f, g_b]
            c = gf * c + gi * gg
            h = go * jnp.tanh(c)
            hs.append(h)

        # ---- assemble hidden sequence at trace time (no in-loop scatter / reverse-index math) --
        h_fwd = jnp.concatenate([hs[t][:, 0:H] for t in range(T)], axis=0)          # (T, H)
        h_bwd = jnp.concatenate([hs[T - 1 - t][:, H:H2] for t in range(T)], axis=0)  # (T, H)
        hseq = jnp.concatenate([h_fwd, h_bwd], axis=1)                               # (T, 2H)

        # ---- hidden2tag: one (T,2H)@(2H,S) matmul, single store ----
        feats = (jnp.dot(hseq, wtag_ref[...], preferred_element_type=f32)
                 + btag_ref[...])                                        # (T, S)
        feats_ref[...] = feats

        # ---- Viterbi forward recurrence (fully unrolled; flip = VPU mul + XLU lane-reduce) ----
        trans = transT_ref[...]                                          # hoisted (S, S)
        rows_i = lax.broadcasted_iota(jnp.int32, (S, S), 0)
        cols_i = lax.broadcasted_iota(jnp.int32, (S, S), 1)
        eye = (rows_i == cols_i).astype(f32)
        row_idx_f = rows_i.astype(f32)
        lane = lax.broadcasted_iota(jnp.int32, (1, S), 1)
        fv = jnp.where(lane == start_ix, 0.0, -10000.0).astype(f32)      # (1, S)

        bp_rows = []
        for t in range(T):
            # lane->sublane flip of the forward variable: fv_col[j] = fv[0, j]
            fv_col = jnp.sum(jnp.broadcast_to(fv, (S, S)) * eye,
                             axis=1, keepdims=True)                      # (S, 1)
            ntv = fv_col + trans                                         # ntv[j,i] = fv[j]+trans[i,j]
            m_row = jnp.max(ntv, axis=0, keepdims=True)                  # (1, S)
            bp_row = jnp.min(jnp.where(ntv == m_row, row_idx_f, float(S)),
                             axis=0, keepdims=True)                      # first argmax over prev j
            bp_rows.append(bp_row.astype(jnp.int32))
            fv = m_row + feats[t:t + 1, :]

        # single deferred stores (no per-step masked vst inside the serial loop)
        bptrs_ref[...] = jnp.concatenate(bp_rows, axis=0)                # (T, S) int32
        term_ref[...] = fv + stop_ref[...]

    return kernel


# ------------------------------- wrapper ----------------------------------- #

def _full_spec(shape):
    n = len(shape)
    return pl.BlockSpec(shape, lambda i, n=n: (0,) * n)


def bilstm_crf_forward(embcat, wx, wh, b, h0, c0, wtag, btag, transT, stop_row, *, start_ix):
    T = embcat.shape[0]
    E = embcat.shape[1] // 2
    H = h0.shape[1] // 2
    S = btag.shape[1]
    kernel = make_bilstm_crf_kernel(T, E, H, S, start_ix)
    ins = (embcat, wx, wh, b, h0, c0, wtag, btag, transT, stop_row)
    return pl.pallas_call(
        kernel,
        out_shape=(jax.ShapeDtypeStruct((T, S), jnp.float32),   # feats (for verification)
                   jax.ShapeDtypeStruct((T, S), jnp.int32),     # backpointers
                   jax.ShapeDtypeStruct((1, S), jnp.float32)),  # terminal scores
        grid=(1,),
        in_specs=[_full_spec(a.shape) for a in ins],
        out_specs=(_full_spec((T, S)), _full_spec((T, S)), _full_spec((1, S))),
        compiler_params=pltpu.CompilerParams(dimension_semantics=("arbitrary",)),
    )(*ins)


# --------------------------- host parameter packing ------------------------ #

def pack_lstm(w_ih_f, w_hh_f, b_ih_f, b_hh_f, w_ih_b, w_hh_b, b_ih_b, b_hh_b, H):
    """Pack torch-layout LSTM params (gate rows i,f,g,o) into the fused block-diagonal layout.

    Fused lane layout of the (1, 8H) preactivation: [i_f,i_b,f_f,f_b,o_f,o_b,g_f,g_b]
    (all sigmoid gates first so one sigmoid covers lanes [0, 6H), tanh covers [6H, 8H)).
    """
    E = w_ih_f.shape[1]
    order = (0, 1, 3, 2)  # torch gate-row index of (i, f, o, g)
    zE = jnp.zeros((E, H), jnp.float32)
    zH = jnp.zeros((H, H), jnp.float32)
    wx_cols, wh_cols, b_cols = [], [], []
    for k in order:
        sl = slice(k * H, (k + 1) * H)
        wx_cols += [jnp.concatenate([w_ih_f[sl].T, zE], axis=0),
                    jnp.concatenate([zE, w_ih_b[sl].T], axis=0)]
        wh_cols += [jnp.concatenate([w_hh_f[sl].T, zH], axis=0),
                    jnp.concatenate([zH, w_hh_b[sl].T], axis=0)]
        b_cols += [b_ih_f[sl] + b_hh_f[sl], b_ih_b[sl] + b_hh_b[sl]]
    wx_pack = jnp.concatenate(wx_cols, axis=1)            # (2E, 8H)
    wh_pack = jnp.concatenate(wh_cols, axis=1)            # (2H, 8H)
    b_pack = jnp.concatenate(b_cols).reshape(1, 8 * H)    # (1, 8H)
    return wx_pack, wh_pack, b_pack


# ------------------------------ references --------------------------------- #

def reference_feats(emb, w_ih_f, w_hh_f, b_ih_f, b_hh_f,
                    w_ih_b, w_hh_b, b_ih_b, b_hh_b, h0, c0, w_tag, b_tag, H):
    emb = np.asarray(emb, np.float64)
    T = emb.shape[0]

    def sigmoid(x):
        return 1.0 / (1.0 + np.exp(-x))

    def run(w_ih, w_hh, b_ih, b_hh, h, c, xs):
        w_ih = np.asarray(w_ih, np.float64); w_hh = np.asarray(w_hh, np.float64)
        b_ih = np.asarray(b_ih, np.float64); b_hh = np.asarray(b_hh, np.float64)
        h = np.asarray(h, np.float64).reshape(-1); c = np.asarray(c, np.float64).reshape(-1)
        outs = []
        for x in xs:
            g = w_ih @ x + b_ih + w_hh @ h + b_hh
            i = sigmoid(g[0:H]); f = sigmoid(g[H:2 * H])
            gg = np.tanh(g[2 * H:3 * H]); o = sigmoid(g[3 * H:4 * H])
            c = f * c + i * gg
            h = o * np.tanh(c)
            outs.append(h)
        return outs

    hf = run(w_ih_f, w_hh_f, b_ih_f, b_hh_f, h0[0, 0], c0[0, 0], [emb[t] for t in range(T)])
    hb = run(w_ih_b, w_hh_b, b_ih_b, b_hh_b, h0[1, 0], c0[1, 0], [emb[t] for t in range(T - 1, -1, -1)])
    hb = hb[::-1]
    out = np.stack([np.concatenate([hf[t], hb[t]]) for t in range(T)])
    return out @ np.asarray(w_tag, np.float64).T + np.asarray(b_tag, np.float64)


def reference_viterbi(feats, transitions, start_ix, stop_ix):
    feats = np.asarray(feats, np.float32)
    trans = np.asarray(transitions, np.float32)
    T, S = feats.shape
    fv = np.full((S,), -10000.0, np.float32)
    fv[start_ix] = np.float32(0.0)
    bps = []
    for t in range(T):
        ntv = fv[None, :] + trans            # ntv[i, j] = fv[j] + trans[i, j]
        bps.append(ntv.argmax(axis=1))
        fv = ntv.max(axis=1).astype(np.float32) + feats[t]
    term = fv + trans[stop_ix]
    best_tag = int(term.argmax())
    score = float(term[best_tag])
    path = [best_tag]
    for bp in reversed(bps):
        best_tag = int(bp[best_tag])
        path.append(best_tag)
    assert path.pop() == start_ix
    path.reverse()
    return score, path


# --------------------------------- main ------------------------------------ #

if __name__ == "__main__":
    key = jax.random.PRNGKey(0)
    vocab_size, embedding_dim, hidden_dim = 20, 16, 32
    T = 8  # sentence length
    tag_to_ix = {"B": 0, "I": 1, "O": 2, START_TAG: 3, STOP_TAG: 4}
    S = len(tag_to_ix)
    H = hidden_dim // 2  # per-direction hidden size

    ks = jax.random.split(key, 16)
    emb_table = jax.random.normal(ks[0], (vocab_size, embedding_dim), jnp.float32)
    # LSTM params in torch layout (gate rows i,f,g,o), one set per direction.
    w_ih_f = 0.2 * jax.random.normal(ks[1], (4 * H, embedding_dim), jnp.float32)
    w_hh_f = 0.2 * jax.random.normal(ks[2], (4 * H, H), jnp.float32)
    b_ih_f = 0.1 * jax.random.normal(ks[3], (4 * H,), jnp.float32)
    b_hh_f = 0.1 * jax.random.normal(ks[4], (4 * H,), jnp.float32)
    w_ih_b = 0.2 * jax.random.normal(ks[5], (4 * H, embedding_dim), jnp.float32)
    w_hh_b = 0.2 * jax.random.normal(ks[6], (4 * H, H), jnp.float32)
    b_ih_b = 0.1 * jax.random.normal(ks[7], (4 * H,), jnp.float32)
    b_hh_b = 0.1 * jax.random.normal(ks[8], (4 * H,), jnp.float32)
    # TODO(synk): torch init_hidden() draws fresh randn each forward call; we use one fixed draw.
    h0 = jax.random.normal(ks[9], (2, 1, H), jnp.float32)
    c0 = jax.random.normal(ks[10], (2, 1, H), jnp.float32)
    # hidden2tag Linear(hidden_dim, S) in torch layout.
    w_tag = 0.2 * jax.random.normal(ks[11], (S, hidden_dim), jnp.float32)
    b_tag = 0.1 * jax.random.normal(ks[12], (S,), jnp.float32)
    transitions = jax.random.normal(ks[13], (S, S), jnp.float32)
    transitions = transitions.at[tag_to_ix[START_TAG], :].set(-10000.0)
    transitions = transitions.at[:, tag_to_ix[STOP_TAG]].set(-10000.0)
    sentence = jax.random.randint(ks[14], (T,), 0, vocab_size, dtype=jnp.int32)

    # --- host glue: embedding gather + parameter/data packing ---
    emb = emb_table[sentence]                                         # (T, E)
    embcat = jnp.concatenate([emb, emb[::-1]], axis=1)                # (T, 2E): [x_t | x_{T-1-t}]
    wx_pack, wh_pack, b_pack = pack_lstm(
        w_ih_f, w_hh_f, b_ih_f, b_hh_f, w_ih_b, w_hh_b, b_ih_b, b_hh_b, H)
    h0_pack = jnp.concatenate([h0[0], h0[1]], axis=1)                 # (1, 2H)
    c0_pack = jnp.concatenate([c0[0], c0[1]], axis=1)                 # (1, 2H)
    wtag_pack = w_tag.T                                               # (2H, S)
    btag_pack = b_tag.reshape(1, S)
    transT = transitions.T                                            # transT[j, i] = trans[i, j]
    stop_row = transitions[tag_to_ix[STOP_TAG]].reshape(1, S)

    # --- forward(sentence): single fused kernel ---
    feats, bptrs, term = bilstm_crf_forward(
        embcat, wx_pack, wh_pack, b_pack, h0_pack, c0_pack,
        wtag_pack, btag_pack, transT, stop_row, start_ix=tag_to_ix[START_TAG])
    jax.block_until_ready((feats, bptrs, term))

    # --- host backpointer chase (mirrors torch _viterbi_decode tail) ---
    term_np = np.asarray(term)[0]
    bptrs_np = np.asarray(bptrs)
    best_tag_id = int(np.argmax(term_np))
    path_score = float(term_np[best_tag_id])
    best_path = [best_tag_id]
    for t in range(T - 1, -1, -1):
        best_tag_id = int(bptrs_np[t, best_tag_id])
        best_path.append(best_tag_id)
    start = best_path.pop()
    assert start == tag_to_ix[START_TAG]
    best_path.reverse()
    assert len(best_path) == T
    assert np.isfinite(path_score)

    # --- correctness checks against plain numpy references ---
    feats_ref = reference_feats(np.asarray(emb), w_ih_f, w_hh_f, b_ih_f, b_hh_f,
                                w_ih_b, w_hh_b, b_ih_b, b_hh_b,
                                np.asarray(h0), np.asarray(c0), w_tag, b_tag, H)
    assert np.allclose(np.asarray(feats), feats_ref, rtol=1e-3, atol=1e-3), \
        f"feats mismatch: max abs err {np.max(np.abs(np.asarray(feats) - feats_ref))}"
    ref_score, ref_path = reference_viterbi(np.asarray(feats), np.asarray(transitions),
                                            tag_to_ix[START_TAG], tag_to_ix[STOP_TAG])
    assert best_path == ref_path, f"path mismatch: {best_path} vs {ref_path}"
    assert abs(path_score - ref_score) < 1e-3

    print("KERNEL_OK")
</pallas_src>

<mosaic_0001>
module attributes {stable_mosaic.version = 11 : i64} {
  func.func @kernel(%arg0: i32, %arg1: memref<8x32xf32, #tpu.memory_space<vmem>>, %arg2: memref<32x128xf32, #tpu.memory_space<vmem>>, %arg3: memref<32x128xf32, #tpu.memory_space<vmem>>, %arg4: memref<1x128xf32, #tpu.memory_space<vmem>>, %arg5: memref<1x32xf32, #tpu.memory_space<vmem>>, %arg6: memref<1x32xf32, #tpu.memory_space<vmem>>, %arg7: memref<32x5xf32, #tpu.memory_space<vmem>>, %arg8: memref<1x5xf32, #tpu.memory_space<vmem>>, %arg9: memref<5x5xf32, #tpu.memory_space<vmem>>, %arg10: memref<1x5xf32, #tpu.memory_space<vmem>>, %arg11: memref<8x5xf32, #tpu.memory_space<vmem>>, %arg12: memref<8x5xi32, #tpu.memory_space<vmem>>, %arg13: memref<1x5xf32, #tpu.memory_space<vmem>>) attributes {dimension_semantics = [#tpu.dimension_semantics<arbitrary>], iteration_bounds = array<i64: 1>, scalar_prefetch = 0 : i64, scratch_operands = 0 : i64, tpu.core_type = #tpu.core_type<tc>, window_params = [{pipeline_mode = #tpu.pipeline_mode<synchronous>, transform_indices = @transform_0, window_bounds = array<i64: 8, 32>}, {pipeline_mode = #tpu.pipeline_mode<synchronous>, transform_indices = @transform_1, window_bounds = array<i64: 32, 128>}, {pipeline_mode = #tpu.pipeline_mode<synchronous>, transform_indices = @transform_2, window_bounds = array<i64: 32, 128>}, {pipeline_mode = #tpu.pipeline_mode<synchronous>, transform_indices = @transform_3, window_bounds = array<i64: 1, 128>}, {pipeline_mode = #tpu.pipeline_mode<synchronous>, transform_indices = @transform_4, window_bounds = array<i64: 1, 32>}, {pipeline_mode = #tpu.pipeline_mode<synchronous>, transform_indices = @transform_5, window_bounds = array<i64: 1, 32>}, {pipeline_mode = #tpu.pipeline_mode<synchronous>, transform_indices = @transform_6, window_bounds = array<i64: 32, 5>}, {pipeline_mode = #tpu.pipeline_mode<synchronous>, transform_indices = @transform_7, window_bounds = array<i64: 1, 5>}, {pipeline_mode = #tpu.pipeline_mode<synchronous>, transform_indices = @transform_8, window_bounds = array<i64: 5, 5>}, {pipeline_mode = #tpu.pipeline_mode<synchronous>, transform_indices = @transform_9, window_bounds = array<i64: 1, 5>}, {pipeline_mode = #tpu.pipeline_mode<synchronous>, transform_indices = @transform_10, window_bounds = array<i64: 8, 5>}, {pipeline_mode = #tpu.pipeline_mode<synchronous>, transform_indices = @transform_11, window_bounds = array<i64: 8, 5>}, {pipeline_mode = #tpu.pipeline_mode<synchronous>, transform_indices = @transform_12, window_bounds = array<i64: 1, 5>}]} {
    %c0 = arith.constant 0 : index
    %c0_0 = arith.constant 0 : index
    %0 = vector.load %arg1[%c0, %c0_0] : memref<8x32xf32, #tpu.memory_space<vmem>>, vector<8x32xf32>
    %c0_1 = arith.constant 0 : index
    %c0_2 = arith.constant 0 : index
    %1 = vector.load %arg2[%c0_1, %c0_2] : memref<32x128xf32, #tpu.memory_space<vmem>>, vector<32x128xf32>
    %cst = arith.constant dense<0.000000e+00> : vector<8x128xf32>
    %2 = tpu.matmul %0, %1, %cst {dimension_numbers = #tpu.dot_dimension_numbers<[1], [0], [0], [1], [0, 0, 1, 1], [], []>} : vector<8x32xf32>, vector<32x128xf32>, vector<8x128xf32> -> vector<8x128xf32>
    %c0_3 = arith.constant 0 : index
    %c0_4 = arith.constant 0 : index
    %3 = vector.load %arg4[%c0_3, %c0_4] : memref<1x128xf32, #tpu.memory_space<vmem>>, vector<1x128xf32>
    %4 = vector.broadcast %3 : vector<1x128xf32> to vector<8x128xf32>
    %5 = arith.addf %2, %4 : vector<8x128xf32>
    %c0_5 = arith.constant 0 : index
    %c0_6 = arith.constant 0 : index
    %6 = vector.load %arg3[%c0_5, %c0_6] : memref<32x128xf32, #tpu.memory_space<vmem>>, vector<32x128xf32>
    %c0_7 = arith.constant 0 : index
    %c0_8 = arith.constant 0 : index
    %7 = vector.load %arg5[%c0_7, %c0_8] : memref<1x32xf32, #tpu.memory_space<vmem>>, vector<1x32xf32>
    %c0_9 = arith.constant 0 : index
    %c0_10 = arith.constant 0 : index
    %8 = vector.load %arg6[%c0_9, %c0_10] : memref<1x32xf32, #tpu.memory_space<vmem>>, vector<1x32xf32>
    %9 = vector.extract_strided_slice %5 {offsets = [0, 0], sizes = [1, 128], strides = [1, 1]} : vector<8x128xf32> to vector<1x128xf32>
    %cst_11 = arith.constant dense<0.000000e+00> : vector<1x128xf32>
    %10 = tpu.matmul %7, %6, %cst_11 {dimension_numbers = #tpu.dot_dimension_numbers<[1], [0], [0], [1], [0, 0, 1, 1], [], []>} : vector<1x32xf32>, vector<32x128xf32>, vector<1x128xf32> -> vector<1x128xf32>
    %11 = arith.addf %9, %10 : vector<1x128xf32>
    %12 = vector.extract_strided_slice %11 {offsets = [0, 0], sizes = [1, 96], strides = [1, 1]} : vector<1x128xf32> to vector<1x96xf32>
    %13 = arith.negf %12 : vector<1x96xf32>
    %14 = math.exp %13 : vector<1x96xf32>
    %cst_12 = arith.constant 1.000000e+00 : f32
    %15 = vector.broadcast %cst_12 : f32 to vector<1x96xf32>
    %16 = arith.addf %15, %14 : vector<1x96xf32>
    %17 = arith.divf %15, %16 : vector<1x96xf32>
    %18 = vector.extract_strided_slice %17 {offsets = [0, 0], sizes = [1, 32], strides = [1, 1]} : vector<1x96xf32> to vector<1x32xf32>
    %19 = vector.extract_strided_slice %17 {offsets = [0, 32], sizes = [1, 32], strides = [1, 1]} : vector<1x96xf32> to vector<1x32xf32>
    %20 = vector.extract_strided_slice %17 {offsets = [0, 64], sizes = [1, 32], strides = [1, 1]} : vector<1x96xf32> to vector<1x32xf32>
    %21 = vector.extract_strided_slice %11 {offsets = [0, 96], sizes = [1, 32], strides = [1, 1]} : vector<1x128xf32> to vector<1x32xf32>
    %22 = math.tanh %21 : vector<1x32xf32>
    %23 = arith.mulf %19, %8 : vector<1x32xf32>
    %24 = arith.mulf %18, %22 : vector<1x32xf32>
    %25 = arith.addf %23, %24 : vector<1x32xf32>
    %26 = math.tanh %25 : vector<1x32xf32>
    %27 = arith.mulf %20, %26 : vector<1x32xf32>
    %28 = vector.extract_strided_slice %5 {offsets = [1, 0], sizes = [1, 128], strides = [1, 1]} : vector<8x128xf32> to vector<1x128xf32>
    %cst_13 = arith.constant dense<0.000000e+00> : vector<1x128xf32>
    %29 = tpu.matmul %27, %6, %cst_13 {dimension_numbers = #tpu.dot_dimension_numbers<[1], [0], [0], [1], [0, 0, 1, 1], [], []>} : vector<1x32xf32>, vector<32x128xf32>, vector<1x128xf32> -> vector<1x128xf32>
    %30 = arith.addf %28, %29 : vector<1x128xf32>
    %31 = vector.extract_strided_slice %30 {offsets = [0, 0], sizes = [1, 96], strides = [1, 1]} : vector<1x128xf32> to vector<1x96xf32>
    %32 = arith.negf %31 : vector<1x96xf32>
    %33 = math.exp %32 : vector<1x96xf32>
    %cst_14 = arith.constant 1.000000e+00 : f32
    %34 = vector.broadcast %cst_14 : f32 to vector<1x96xf32>
    %35 = arith.addf %34, %33 : vector<1x96xf32>
    %36 = arith.divf %34, %35 : vector<1x96xf32>
    %37 = vector.extract_strided_slice %36 {offsets = [0, 0], sizes = [1, 32], strides = [1, 1]} : vector<1x96xf32> to vector<1x32xf32>
    %38 = vector.extract_strided_slice %36 {offsets = [0, 32], sizes = [1, 32], strides = [1, 1]} : vector<1x96xf32> to vector<1x32xf32>
    %39 = vector.extract_strided_slice %36 {offsets = [0, 64], sizes = [1, 32], strides = [1, 1]} : vector<1x96xf32> to vector<1x32xf32>
    %40 = vector.extract_strided_slice %30 {offsets = [0, 96], sizes = [1, 32], strides = [1, 1]} : vector<1x128xf32> to vector<1x32xf32>
    %41 = math.tanh %40 : vector<1x32xf32>
    %42 = arith.mulf %38, %25 : vector<1x32xf32>
    %43 = arith.mulf %37, %41 : vector<1x32xf32>
    %44 = arith.addf %42, %43 : vector<1x32xf32>
    %45 = math.tanh %44 : vector<1x32xf32>
    %46 = arith.mulf %39, %45 : vector<1x32xf32>
    %47 = vector.extract_strided_slice %5 {offsets = [2, 0], sizes = [1, 128], strides = [1, 1]} : vector<8x128xf32> to vector<1x128xf32>
    %cst_15 = arith.constant dense<0.000000e+00> : vector<1x128xf32>
    %48 = tpu.matmul %46, %6, %cst_15 {dimension_numbers = #tpu.dot_dimension_numbers<[1], [0], [0], [1], [0, 0, 1, 1], [], []>} : vector<1x32xf32>, vector<32x128xf32>, vector<1x128xf32> -> vector<1x128xf32>
    %49 = arith.addf %47, %48 : vector<1x128xf32>
    %50 = vector.extract_strided_slice %49 {offsets = [0, 0], sizes = [1, 96], strides = [1, 1]} : vector<1x128xf32> to vector<1x96xf32>
    %51 = arith.negf %50 : vector<1x96xf32>
    %52 = math.exp %51 : vector<1x96xf32>
    %cst_16 = arith.constant 1.000000e+00 : f32
    %53 = vector.broadcast %cst_16 : f32 to vector<1x96xf32>
    %54 = arith.addf %53, %52 : vector<1x96xf32>
    %55 = arith.divf %53, %54 : vector<1x96xf32>
    %56 = vector.extract_strided_slice %55 {offsets = [0, 0], sizes = [1, 32], strides = [1, 1]} : vector<1x96xf32> to vector<1x32xf32>
    %57 = vector.extract_strided_slice %55 {offsets = [0, 32], sizes = [1, 32], strides = [1, 1]} : vector<1x96xf32> to vector<1x32xf32>
    %58 = vector.extract_strided_slice %55 {offsets = [0, 64], sizes = [1, 32], strides = [1, 1]} : vector<1x96xf32> to vector<1x32xf32>
    %59 = vector.extract_strided_slice %49 {offsets = [0, 96], sizes = [1, 32], strides = [1, 1]} : vector<1x128xf32> to vector<1x32xf32>
    %60 = math.tanh %59 : vector<1x32xf32>
    %61 = arith.mulf %57, %44 : vector<1x32xf32>
    %62 = arith.mulf %56, %60 : vector<1x32xf32>
    %63 = arith.addf %61, %62 : vector<1x32xf32>
    %64 = math.tanh %63 : vector<1x32xf32>
    %65 = arith.mulf %58, %64 : vector<1x32xf32>
    %66 = vector.extract_strided_slice %5 {offsets = [3, 0], sizes = [1, 128], strides = [1, 1]} : vector<8x128xf32> to vector<1x128xf32>
    %cst_17 = arith.constant dense<0.000000e+00> : vector<1x128xf32>
    %67 = tpu.matmul %65, %6, %cst_17 {dimension_numbers = #tpu.dot_dimension_numbers<[1], [0], [0], [1], [0, 0, 1, 1], [], []>} : vector<1x32xf32>, vector<32x128xf32>, vector<1x128xf32> -> vector<1x128xf32>
    %68 = arith.addf %66, %67 : vector<1x128xf32>
    %69 = vector.extract_strided_slice %68 {offsets = [0, 0], sizes = [1, 96], strides = [1, 1]} : vector<1x128xf32> to vector<1x96xf32>
    %70 = arith.negf %69 : vector<1x96xf32>
    %71 = math.exp %70 : vector<1x96xf32>
    %cst_18 = arith.constant 1.000000e+00 : f32
    %72 = vector.broadcast %cst_18 : f32 to vector<1x96xf32>
    %73 = arith.addf %72, %71 : vector<1x96xf32>
    %74 = arith.divf %72, %73 : vector<1x96xf32>
    %75 = vector.extract_strided_slice %74 {offsets = [0, 0], sizes = [1, 32], strides = [1, 1]} : vector<1x96xf32> to vector<1x32xf32>
    %76 = vector.extract_strided_slice %74 {offsets = [0, 32], sizes = [1, 32], strides = [1, 1]} : vector<1x96xf32> to vector<1x32xf32>
    %77 = vector.extract_strided_slice %74 {offsets = [0, 64], sizes = [1, 32], strides = [1, 1]} : vector<1x96xf32> to vector<1x32xf32>
    %78 = vector.extract_strided_slice %68 {offsets = [0, 96], sizes = [1, 32], strides = [1, 1]} : vector<1x128xf32> to vector<1x32xf32>
    %79 = math.tanh %78 : vector<1x32xf32>
    %80 = arith.mulf %76, %63 : vector<1x32xf32>
    %81 = arith.mulf %75, %79 : vector<1x32xf32>
    %82 = arith.addf %80, %81 : vector<1x32xf32>
    %83 = math.tanh %82 : vector<1x32xf32>
    %84 = arith.mulf %77, %83 : vector<1x32xf32>
    %85 = vector.extract_strided_slice %5 {offsets = [4, 0], sizes = [1, 128], strides = [1, 1]} : vector<8x128xf32> to vector<1x128xf32>
    %cst_19 = arith.constant dense<0.000000e+00> : vector<1x128xf32>
    %86 = tpu.matmul %84, %6, %cst_19 {dimension_numbers = #tpu.dot_dimension_numbers<[1], [0], [0], [1], [0, 0, 1, 1], [], []>} : vector<1x32xf32>, vector<32x128xf32>, vector<1x128xf32> -> vector<1x128xf32>
    %87 = arith.addf %85, %86 : vector<1x128xf32>
    %88 = vector.extract_strided_slice %87 {offsets = [0, 0], sizes = [1, 96], strides = [1, 1]} : vector<1x128xf32> to vector<1x96xf32>
    %89 = arith.negf %88 : vector<1x96xf32>
    %90 = math.exp %89 : vector<1x96xf32>
    %cst_20 = arith.constant 1.000000e+00 : f32
    %91 = vector.broadcast %cst_20 : f32 to vector<1x96xf32>
    %92 = arith.addf %91, %90 : vector<1x96xf32>
    %93 = arith.divf %91, %92 : vector<1x96xf32>
    %94 = vector.extract_strided_slice %93 {offsets = [0, 0], sizes = [1, 32], strides = [1, 1]} : vector<1x96xf32> to vector<1x32xf32>
    %95 = vector.extract_strided_slice %93 {offsets = [0, 32], sizes = [1, 32], strides = [1, 1]} : vector<1x96xf32> to vector<1x32xf32>
    %96 = vector.extract_strided_slice %93 {offsets = [0, 64], sizes = [1, 32], strides = [1, 1]} : vector<1x96xf32> to vector<1x32xf32>
    %97 = vector.extract_strided_slice %87 {offsets = [0, 96], sizes = [1, 32], strides = [1, 1]} : vector<1x128xf32> to vector<1x32xf32>
    %98 = math.tanh %97 : vector<1x32xf32>
    %99 = arith.mulf %95, %82 : vector<1x32xf32>
    %100 = arith.mulf %94, %98 : vector<1x32xf32>
    %101 = arith.addf %99, %100 : vector<1x32xf32>
    %102 = math.tanh %101 : vector<1x32xf32>
    %103 = arith.mulf %96, %102 : vector<1x32xf32>
    %104 = vector.extract_strided_slice %5 {offsets = [5, 0], sizes = [1, 128], strides = [1, 1]} : vector<8x128xf32> to vector<1x128xf32>
    %cst_21 = arith.constant dense<0.000000e+00> : vector<1x128xf32>
    %105 = tpu.matmul %103, %6, %cst_21 {dimension_numbers = #tpu.dot_dimension_numbers<[1], [0], [0], [1], [0, 0, 1, 1], [], []>} : vector<1x32xf32>, vector<32x128xf32>, vector<1x128xf32> -> vector<1x128xf32>
    %106 = arith.addf %104, %105 : vector<1x128xf32>
    %107 = vector.extract_strided_slice %106 {offsets = [0, 0], sizes = [1, 96], strides = [1, 1]} : vector<1x128xf32> to vector<1x96xf32>
    %108 = arith.negf %107 : vector<1x96xf32>
    %109 = math.exp %108 : vector<1x96xf32>
    %cst_22 = arith.constant 1.000000e+00 : f32
    %110 = vector.broadcast %cst_22 : f32 to vector<1x96xf32>
    %111 = arith.addf %110, %109 : vector<1x96xf32>
    %112 = arith.divf %110, %111 : vector<1x96xf32>
    %113 = vector.extract_strided_slice %112 {offsets = [0, 0], sizes = [1, 32], strides = [1, 1]} : vector<1x96xf32> to vector<1x32xf32>
    %114 = vector.extract_strided_slice %112 {offsets = [0, 32], sizes = [1, 32], strides = [1, 1]} : vector<1x96xf32> to vector<1x32xf32>
    %115 = vector.extract_strided_slice %112 {offsets = [0, 64], sizes = [1, 32], strides = [1, 1]} : vector<1x96xf32> to vector<1x32xf32>
    %116 = vector.extract_strided_slice %106 {offsets = [0, 96], sizes = [1, 32], strides = [1, 1]} : vector<1x128xf32> to vector<1x32xf32>
    %117 = math.tanh %116 : vector<1x32xf32>
    %118 = arith.mulf %114, %101 : vector<1x32xf32>
    %119 = arith.mulf %113, %117 : vector<1x32xf32>
    %120 = arith.addf %118, %119 : vector<1x32xf32>
    %121 = math.tanh %120 : vector<1x32xf32>
    %122 = arith.mulf %115, %121 : vector<1x32xf32>
    %123 = vector.extract_strided_slice %5 {offsets = [6, 0], sizes = [1, 128], strides = [1, 1]} : vector<8x128xf32> to vector<1x128xf32>
    %cst_23 = arith.constant dense<0.000000e+00> : vector<1x128xf32>
    %124 = tpu.matmul %122, %6, %cst_23 {dimension_numbers = #tpu.dot_dimension_numbers<[1], [0], [0], [1], [0, 0, 1, 1], [], []>} : vector<1x32xf32>, vector<32x128xf32>, vector<1x128xf32> -> vector<1x128xf32>
    %125 = arith.addf %123, %124 : vector<1x128xf32>
    %126 = vector.extract_strided_slice %125 {offsets = [0, 0], sizes = [1, 96], strides = [1, 1]} : vector<1x128xf32> to vector<1x96xf32>
    %127 = arith.negf %126 : vector<1x96xf32>
    %128 = math.exp %127 : vector<1x96xf32>
    %cst_24 = arith.constant 1.000000e+00 : f32
    %129 = vector.broadcast %cst_24 : f32 to vector<1x96xf32>
    %130 = arith.addf %129, %128 : vector<1x96xf32>
    %131 = arith.divf %129, %130 : vector<1x96xf32>
    %132 = vector.extract_strided_slice %131 {offsets = [0, 0], sizes = [1, 32], strides = [1, 1]} : vector<1x96xf32> to vector<1x32xf32>
    %133 = vector.extract_strided_slice %131 {offsets = [0, 32], sizes = [1, 32], strides = [1, 1]} : vector<1x96xf32> to vector<1x32xf32>
    %134 = vector.extract_strided_slice %131 {offsets = [0, 64], sizes = [1, 32], strides = [1, 1]} : vector<1x96xf32> to vector<1x32xf32>
    %135 = vector.extract_strided_slice %125 {offsets = [0, 96], sizes = [1, 32], strides = [1, 1]} : vector<1x128xf32> to vector<1x32xf32>
    %136 = math.tanh %135 : vector<1x32xf32>
    %137 = arith.mulf %133, %120 : vector<1x32xf32>
    %138 = arith.mulf %132, %136 : vector<1x32xf32>
    %139 = arith.addf %137, %138 : vector<1x32xf32>
    %140 = math.tanh %139 : vector<1x32xf32>
    %141 = arith.mulf %134, %140 : vector<1x32xf32>
    %142 = vector.extract_strided_slice %5 {offsets = [7, 0], sizes = [1, 128], strides = [1, 1]} : vector<8x128xf32> to vector<1x128xf32>
    %cst_25 = arith.constant dense<0.000000e+00> : vector<1x128xf32>
    %143 = tpu.matmul %141, %6, %cst_25 {dimension_numbers = #tpu.dot_dimension_numbers<[1], [0], [0], [1], [0, 0, 1, 1], [], []>} : vector<1x32xf32>, vector<32x128xf32>, vector<1x128xf32> -> vector<1x128xf32>
    %144 = arith.addf %142, %143 : vector<1x128xf32>
    %145 = vector.extract_strided_slice %144 {offsets = [0, 0], sizes = [1, 96], strides = [1, 1]} : vector<1x128xf32> to vector<1x96xf32>
    %146 = arith.negf %145 : vector<1x96xf32>
    %147 = math.exp %146 : vector<1x96xf32>
    %cst_26 = arith.constant 1.000000e+00 : f32
    %148 = vector.broadcast %cst_26 : f32 to vector<1x96xf32>
    %149 = arith.addf %148, %147 : vector<1x96xf32>
    %150 = arith.divf %148, %149 : vector<1x96xf32>
    %151 = vector.extract_strided_slice %150 {offsets = [0, 0], sizes = [1, 32], strides = [1, 1]} : vector<1x96xf32> to vector<1x32xf32>
    %152 = vector.extract_strided_slice %150 {offsets = [0, 32], sizes = [1, 32], strides = [1, 1]} : vector<1x96xf32> to vector<1x32xf32>
    %153 = vector.extract_strided_slice %150 {offsets = [0, 64], sizes = [1, 32], strides = [1, 1]} : vector<1x96xf32> to vector<1x32xf32>
    %154 = vector.extract_strided_slice %144 {offsets = [0, 96], sizes = [1, 32], strides = [1, 1]} : vector<1x128xf32> to vector<1x32xf32>
    %155 = math.tanh %154 : vector<1x32xf32>
    %156 = arith.mulf %152, %139 : vector<1x32xf32>
    %157 = arith.mulf %151, %155 : vector<1x32xf32>
    %158 = arith.addf %156, %157 : vector<1x32xf32>
    %159 = math.tanh %158 : vector<1x32xf32>
    %160 = arith.mulf %153, %159 : vector<1x32xf32>
    %161 = vector.extract_strided_slice %27 {offsets = [0, 0], sizes = [1, 16], strides = [1, 1]} : vector<1x32xf32> to vector<1x16xf32>
    %162 = vector.extract_strided_slice %46 {offsets = [0, 0], sizes = [1, 16], strides = [1, 1]} : vector<1x32xf32> to vector<1x16xf32>
    %163 = vector.extract_strided_slice %65 {offsets = [0, 0], sizes = [1, 16], strides = [1, 1]} : vector<1x32xf32> to vector<1x16xf32>
    %164 = vector.extract_strided_slice %84 {offsets = [0, 0], sizes = [1, 16], strides = [1, 1]} : vector<1x32xf32> to vector<1x16xf32>
    %165 = vector.extract_strided_slice %103 {offsets = [0, 0], sizes = [1, 16], strides = [1, 1]} : vector<1x32xf32> to vector<1x16xf32>
    %166 = vector.extract_strided_slice %122 {offsets = [0, 0], sizes = [1, 16], strides = [1, 1]} : vector<1x32xf32> to vector<1x16xf32>
    %167 = vector.extract_strided_slice %141 {offsets = [0, 0], sizes = [1, 16], strides = [1, 1]} : vector<1x32xf32> to vector<1x16xf32>
    %168 = vector.extract_strided_slice %160 {offsets = [0, 0], sizes = [1, 16], strides = [1, 1]} : vector<1x32xf32> to vector<1x16xf32>
    %169 = tpu.concatenate %161, %162, %163, %164, %165, %166, %167, %168 in 0 : vector<1x16xf32>, vector<1x16xf32>, vector<1x16xf32>, vector<1x16xf32>, vector<1x16xf32>, vector<1x16xf32>, vector<1x16xf32>, vector<1x16xf32> -> vector<8x16xf32>
    %170 = vector.extract_strided_slice %160 {offsets = [0, 16], sizes = [1, 16], strides = [1, 1]} : vector<1x32xf32> to vector<1x16xf32>
    %171 = vector.extract_strided_slice %141 {offsets = [0, 16], sizes = [1, 16], strides = [1, 1]} : vector<1x32xf32> to vector<1x16xf32>
    %172 = vector.extract_strided_slice %122 {offsets = [0, 16], sizes = [1, 16], strides = [1, 1]} : vector<1x32xf32> to vector<1x16xf32>
    %173 = vector.extract_strided_slice %103 {offsets = [0, 16], sizes = [1, 16], strides = [1, 1]} : vector<1x32xf32> to vector<1x16xf32>
    %174 = vector.extract_strided_slice %84 {offsets = [0, 16], sizes = [1, 16], strides = [1, 1]} : vector<1x32xf32> to vector<1x16xf32>
    %175 = vector.extract_strided_slice %65 {offsets = [0, 16], sizes = [1, 16], strides = [1, 1]} : vector<1x32xf32> to vector<1x16xf32>
    %176 = vector.extract_strided_slice %46 {offsets = [0, 16], sizes = [1, 16], strides = [1, 1]} : vector<1x32xf32> to vector<1x16xf32>
    %177 = vector.extract_strided_slice %27 {offsets = [0, 16], sizes = [1, 16], strides = [1, 1]} : vector<1x32xf32> to vector<1x16xf32>
    %178 = tpu.concatenate %170, %171, %172, %173, %174, %175, %176, %177 in 0 : vector<1x16xf32>, vector<1x16xf32>, vector<1x16xf32>, vector<1x16xf32>, vector<1x16xf32>, vector<1x16xf32>, vector<1x16xf32>, vector<1x16xf32> -> vector<8x16xf32>
    %179 = tpu.concatenate %169, %178 in 1 : vector<8x16xf32>, vector<8x16xf32> -> vector<8x32xf32>
    %c0_27 = arith.constant 0 : index
    %c0_28 = arith.constant 0 : index
    %180 = vector.load %arg7[%c0_27, %c0_28] : memref<32x5xf32, #tpu.memory_space<vmem>>, vector<32x5xf32>
    %cst_29 = arith.constant dense<0.000000e+00> : vector<8x5xf32>
    %181 = tpu.matmul %179, %180, %cst_29 {dimension_numbers = #tpu.dot_dimension_numbers<[1], [0], [0], [1], [0, 0, 1, 1], [], []>} : vector<8x32xf32>, vector<32x5xf32>, vector<8x5xf32> -> vector<8x5xf32>
    %c0_30 = arith.constant 0 : index
    %c0_31 = arith.constant 0 : index
    %182 = vector.load %arg8[%c0_30, %c0_31] : memref<1x5xf32, #tpu.memory_space<vmem>>, vector<1x5xf32>
    %183 = vector.broadcast %182 : vector<1x5xf32> to vector<8x5xf32>
    %184 = arith.addf %181, %183 : vector<8x5xf32>
    %c0_32 = arith.constant 0 : index
    %c0_33 = arith.constant 0 : index
    %185 = vector.load %arg11[%c0_32, %c0_33] : memref<8x5xf32, #tpu.memory_space<vmem>>, vector<8x5xf32>
    tpu.vector_store %arg11[%c0_32, %c0_33], %184 {strides = array<i32>} : memref<8x5xf32, #tpu.memory_space<vmem>>, vector<8x5xf32>,
    %c0_34 = arith.constant 0 : index
    %c0_35 = arith.constant 0 : index
    %186 = vector.load %arg9[%c0_34, %c0_35] : memref<5x5xf32, #tpu.memory_space<vmem>>, vector<5x5xf32>
    %187 = tpu.iota {dimensions = array<i32: 0>} : vector<5x5xi32>
    %188 = tpu.iota {dimensions = array<i32: 1>} : vector<5x5xi32>
    %189 = arith.cmpi eq, %187, %188 : vector<5x5xi32>
    %190 = arith.extui %189 : vector<5x5xi1> to vector<5x5xi32>
    %191 = arith.sitofp %190 : vector<5x5xi32> to vector<5x5xf32>
    %192 = arith.sitofp %187 : vector<5x5xi32> to vector<5x5xf32>
    %193 = tpu.iota {dimensions = array<i32: 1>} : vector<1x5xi32>
    %c3_i32 = arith.constant 3 : i32
    %194 = vector.broadcast %c3_i32 : i32 to vector<1x5xi32>
    %195 = arith.cmpi eq, %193, %194 : vector<1x5xi32>
    %cst_36 = arith.constant 0.000000e+00 : f32
    %cst_37 = arith.constant -1.000000e+04 : f32
    %196 = vector.broadcast %cst_36 : f32 to vector<1x5xf32>
    %197 = vector.broadcast %cst_37 : f32 to vector<1x5xf32>
    %198 = arith.select %195, %196, %197 : vector<1x5xi1>, vector<1x5xf32>
    %199 = vector.shape_cast %198 : vector<1x5xf32> to vector<1x5xf32>
    %200 = vector.broadcast %199 : vector<1x5xf32> to vector<5x5xf32>
    %201 = arith.mulf %200, %191 : vector<5x5xf32>
    %cst_38 = arith.constant dense<0.000000e+00> : vector<5xf32>
    %202 = vector.multi_reduction <add>, %201, %cst_38 [1] : vector<5x5xf32> to vector<5xf32>
    %203 = vector.shape_cast %202 : vector<5xf32> to vector<5x1xf32>
    %204 = vector.broadcast %203 : vector<5x1xf32> to vector<5x5xf32>
    %205 = arith.addf %204, %186 : vector<5x5xf32>
    %cst_39 = arith.constant dense<0xFF800000> : vector<5xf32>
    %206 = vector.multi_reduction <maximumf>, %205, %cst_39 [0] : vector<5x5xf32> to vector<5xf32>
    %207 = vector.shape_cast %206 : vector<5xf32> to vector<1x5xf32>
    %208 = vector.broadcast %207 : vector<1x5xf32> to vector<5x5xf32>
    %209 = arith.cmpf oeq, %205, %208 : vector<5x5xf32>
    %cst_40 = arith.constant 5.000000e+00 : f32
    %210 = vector.broadcast %cst_40 : f32 to vector<5x5xf32>
    %211 = arith.select %209, %192, %210 : vector<5x5xi1>, vector<5x5xf32>
    %cst_41 = arith.constant dense<0x7F800000> : vector<5xf32>
    %212 = vector.multi_reduction <minimumf>, %211, %cst_41 [0] : vector<5x5xf32> to vector<5xf32>
    %213 = vector.shape_cast %212 : vector<5xf32> to vector<1x5xf32>
    %214 = arith.fptosi %213 : vector<1x5xf32> to vector<1x5xi32>
    %215 = vector.extract_strided_slice %184 {offsets = [0, 0], sizes = [1, 5], strides = [1, 1]} : vector<8x5xf32> to vector<1x5xf32>
    %216 = arith.addf %207, %215 : vector<1x5xf32>
    %217 = vector.shape_cast %216 : vector<1x5xf32> to vector<1x5xf32>
    %218 = vector.broadcast %217 : vector<1x5xf32> to vector<5x5xf32>
    %219 = arith.mulf %218, %191 : vector<5x5xf32>
    %cst_42 = arith.constant dense<0.000000e+00> : vector<5xf32>
    %220 = vector.multi_reduction <add>, %219, %cst_42 [1] : vector<5x5xf32> to vector<5xf32>
    %221 = vector.shape_cast %220 : vector<5xf32> to vector<5x1xf32>
    %222 = vector.broadcast %221 : vector<5x1xf32> to vector<5x5xf32>
    %223 = arith.addf %222, %186 : vector<5x5xf32>
    %cst_43 = arith.constant dense<0xFF800000> : vector<5xf32>
    %224 = vector.multi_reduction <maximumf>, %223, %cst_43 [0] : vector<5x5xf32> to vector<5xf32>
    %225 = vector.shape_cast %224 : vector<5xf32> to vector<1x5xf32>
    %226 = vector.broadcast %225 : vector<1x5xf32> to vector<5x5xf32>
    %227 = arith.cmpf oeq, %223, %226 : vector<5x5xf32>
    %cst_44 = arith.constant 5.000000e+00 : f32
    %228 = vector.broadcast %cst_44 : f32 to vector<5x5xf32>
    %229 = arith.select %227, %192, %228 : vector<5x5xi1>, vector<5x5xf32>
    %cst_45 = arith.constant dense<0x7F800000> : vector<5xf32>
    %230 = vector.multi_reduction <minimumf>, %229, %cst_45 [0] : vector<5x5xf32> to vector<5xf32>
    %231 = vector.shape_cast %230 : vector<5xf32> to vector<1x5xf32>
    %232 = arith.fptosi %231 : vector<1x5xf32> to vector<1x5xi32>
    %233 = vector.extract_strided_slice %184 {offsets = [1, 0], sizes = [1, 5], strides = [1, 1]} : vector<8x5xf32> to vector<1x5xf32>
    %234 = arith.addf %225, %233 : vector<1x5xf32>
    %235 = vector.shape_cast %234 : vector<1x5xf32> to vector<1x5xf32>
    %236 = vector.broadcast %235 : vector<1x5xf32> to vector<5x5xf32>
    %237 = arith.mulf %236, %191 : vector<5x5xf32>
    %cst_46 = arith.constant dense<0.000000e+00> : vector<5xf32>
    %238 = vector.multi_reduction <add>, %237, %cst_46 [1] : vector<5x5xf32> to vector<5xf32>
    %239 = vector.shape_cast %238 : vector<5xf32> to vector<5x1xf32>
    %240 = vector.broadcast %239 : vector<5x1xf32> to vector<5x5xf32>
    %241 = arith.addf %240, %186 : vector<5x5xf32>
    %cst_47 = arith.constant dense<0xFF800000> : vector<5xf32>
    %242 = vector.multi_reduction <maximumf>, %241, %cst_47 [0] : vector<5x5xf32> to vector<5xf32>
    %243 = vector.shape_cast %242 : vector<5xf32> to vector<1x5xf32>
    %244 = vector.broadcast %243 : vector<1x5xf32> to vector<5x5xf32>
    %245 = arith.cmpf oeq, %241, %244 : vector<5x5xf32>
    %cst_48 = arith.constant 5.000000e+00 : f32
    %246 = vector.broadcast %cst_48 : f32 to vector<5x5xf32>
    %247 = arith.select %245, %192, %246 : vector<5x5xi1>, vector<5x5xf32>
    %cst_49 = arith.constant dense<0x7F800000> : vector<5xf32>
    %248 = vector.multi_reduction <minimumf>, %247, %cst_49 [0] : vector<5x5xf32> to vector<5xf32>
    %249 = vector.shape_cast %248 : vector<5xf32> to vector<1x5xf32>
    %250 = arith.fptosi %249 : vector<1x5xf32> to vector<1x5xi32>
    %251 = vector.extract_strided_slice %184 {offsets = [2, 0], sizes = [1, 5], strides = [1, 1]} : vector<8x5xf32> to vector<1x5xf32>
    %252 = arith.addf %243, %251 : vector<1x5xf32>
    %253 = vector.shape_cast %252 : vector<1x5xf32> to vector<1x5xf32>
    %254 = vector.broadcast %253 : vector<1x5xf32> to vector<5x5xf32>
    %255 = arith.mulf %254, %191 : vector<5x5xf32>
    %cst_50 = arith.constant dense<0.000000e+00> : vector<5xf32>
    %256 = vector.multi_reduction <add>, %255, %cst_50 [1] : vector<5x5xf32> to vector<5xf32>
    %257 = vector.shape_cast %256 : vector<5xf32> to vector<5x1xf32>
    %258 = vector.broadcast %257 : vector<5x1xf32> to vector<5x5xf32>
    %259 = arith.addf %258, %186 : vector<5x5xf32>
    %cst_51 = arith.constant dense<0xFF800000> : vector<5xf32>
    %260 = vector.multi_reduction <maximumf>, %259, %cst_51 [0] : vector<5x5xf32> to vector<5xf32>
    %261 = vector.shape_cast %260 : vector<5xf32> to vector<1x5xf32>
    %262 = vector.broadcast %261 : vector<1x5xf32> to vector<5x5xf32>
    %263 = arith.cmpf oeq, %259, %262 : vector<5x5xf32>
    %cst_52 = arith.constant 5.000000e+00 : f32
    %264 = vector.broadcast %cst_52 : f32 to vector<5x5xf32>
    %265 = arith.select %263, %192, %264 : vector<5x5xi1>, vector<5x5xf32>
    %cst_53 = arith.constant dense<0x7F800000> : vector<5xf32>
    %266 = vector.multi_reduction <minimumf>, %265, %cst_53 [0] : vector<5x5xf32> to vector<5xf32>
    %267 = vector.shape_cast %266 : vector<5xf32> to vector<1x5xf32>
    %268 = arith.fptosi %267 : vector<1x5xf32> to vector<1x5xi32>
    %269 = vector.extract_strided_slice %184 {offsets = [3, 0], sizes = [1, 5], strides = [1, 1]} : vector<8x5xf32> to vector<1x5xf32>
    %270 = arith.addf %261, %269 : vector<1x5xf32>
    %271 = vector.shape_cast %270 : vector<1x5xf32> to vector<1x5xf32>
    %272 = vector.broadcast %271 : vector<1x5xf32> to vector<5x5xf32>
    %273 = arith.mulf %272, %191 : vector<5x5xf32>
    %cst_54 = arith.constant dense<0.000000e+00> : vector<5xf32>
    %274 = vector.multi_reduction <add>, %273, %cst_54 [1] : vector<5x5xf32> to vector<5xf32>
    %275 = vector.shape_cast %274 : vector<5xf32> to vector<5x1xf32>
    %276 = vector.broadcast %275 : vector<5x1xf32> to vector<5x5xf32>
    %277 = arith.addf %276, %186 : vector<5x5xf32>
    %cst_55 = arith.constant dense<0xFF800000> : vector<5xf32>
    %278 = vector.multi_reduction <maximumf>, %277, %cst_55 [0] : vector<5x5xf32> to vector<5xf32>
    %279 = vector.shape_cast %278 : vector<5xf32> to vector<1x5xf32>
    %280 = vector.broadcast %279 : vector<1x5xf32> to vector<5x5xf32>
    %281 = arith.cmpf oeq, %277, %280 : vector<5x5xf32>
    %cst_56 = arith.constant 5.000000e+00 : f32
    %282 = vector.broadcast %cst_56 : f32 to vector<5x5xf32>
    %283 = arith.select %281, %192, %282 : vector<5x5xi1>, vector<5x5xf32>
    %cst_57 = arith.constant dense<0x7F800000> : vector<5xf32>
    %284 = vector.multi_reduction <minimumf>, %283, %cst_57 [0] : vector<5x5xf32> to vector<5xf32>
    %285 = vector.shape_cast %284 : vector<5xf32> to vector<1x5xf32>
    %286 = arith.fptosi %285 : vector<1x5xf32> to vector<1x5xi32>
    %287 = vector.extract_strided_slice %184 {offsets = [4, 0], sizes = [1, 5], strides = [1, 1]} : vector<8x5xf32> to vector<1x5xf32>
    %288 = arith.addf %279, %287 : vector<1x5xf32>
    %289 = vector.shape_cast %288 : vector<1x5xf32> to vector<1x5xf32>
    %290 = vector.broadcast %289 : vector<1x5xf32> to vector<5x5xf32>
    %291 = arith.mulf %290, %191 : vector<5x5xf32>
    %cst_58 = arith.constant dense<0.000000e+00> : vector<5xf32>
    %292 = vector.multi_reduction <add>, %291, %cst_58 [1] : vector<5x5xf32> to vector<5xf32>
    %293 = vector.shape_cast %292 : vector<5xf32> to vector<5x1xf32>
    %294 = vector.broadcast %293 : vector<5x1xf32> to vector<5x5xf32>
    %295 = arith.addf %294, %186 : vector<5x5xf32>
    %cst_59 = arith.constant dense<0xFF800000> : vector<5xf32>
    %296 = vector.multi_reduction <maximumf>, %295, %cst_59 [0] : vector<5x5xf32> to vector<5xf32>
    %297 = vector.shape_cast %296 : vector<5xf32> to vector<1x5xf32>
    %298 = vector.broadcast %297 : vector<1x5xf32> to vector<5x5xf32>
    %299 = arith.cmpf oeq, %295, %298 : vector<5x5xf32>
    %cst_60 = arith.constant 5.000000e+00 : f32
    %300 = vector.broadcast %cst_60 : f32 to vector<5x5xf32>
    %301 = arith.select %299, %192, %300 : vector<5x5xi1>, vector<5x5xf32>
    %cst_61 = arith.constant dense<0x7F800000> : vector<5xf32>
    %302 = vector.multi_reduction <minimumf>, %301, %cst_61 [0] : vector<5x5xf32> to vector<5xf32>
    %303 = vector.shape_cast %302 : vector<5xf32> to vector<1x5xf32>
    %304 = arith.fptosi %303 : vector<1x5xf32> to vector<1x5xi32>
    %305 = vector.extract_strided_slice %184 {offsets = [5, 0], sizes = [1, 5], strides = [1, 1]} : vector<8x5xf32> to vector<1x5xf32>
    %306 = arith.addf %297, %305 : vector<1x5xf32>
    %307 = vector.shape_cast %306 : vector<1x5xf32> to vector<1x5xf32>
    %308 = vector.broadcast %307 : vector<1x5xf32> to vector<5x5xf32>
    %309 = arith.mulf %308, %191 : vector<5x5xf32>
    %cst_62 = arith.constant dense<0.000000e+00> : vector<5xf32>
    %310 = vector.multi_reduction <add>, %309, %cst_62 [1] : vector<5x5xf32> to vector<5xf32>
    %311 = vector.shape_cast %310 : vector<5xf32> to vector<5x1xf32>
    %312 = vector.broadcast %311 : vector<5x1xf32> to vector<5x5xf32>
    %313 = arith.addf %312, %186 : vector<5x5xf32>
    %cst_63 = arith.constant dense<0xFF800000> : vector<5xf32>
    %314 = vector.multi_reduction <maximumf>, %313, %cst_63 [0] : vector<5x5xf32> to vector<5xf32>
    %315 = vector.shape_cast %314 : vector<5xf32> to vector<1x5xf32>
    %316 = vector.broadcast %315 : vector<1x5xf32> to vector<5x5xf32>
    %317 = arith.cmpf oeq, %313, %316 : vector<5x5xf32>
    %cst_64 = arith.constant 5.000000e+00 : f32
    %318 = vector.broadcast %cst_64 : f32 to vector<5x5xf32>
    %319 = arith.select %317, %192, %318 : vector<5x5xi1>, vector<5x5xf32>
    %cst_65 = arith.constant dense<0x7F800000> : vector<5xf32>
    %320 = vector.multi_reduction <minimumf>, %319, %cst_65 [0] : vector<5x5xf32> to vector<5xf32>
    %321 = vector.shape_cast %320 : vector<5xf32> to vector<1x5xf32>
    %322 = arith.fptosi %321 : vector<1x5xf32> to vector<1x5xi32>
    %323 = vector.extract_strided_slice %184 {offsets = [6, 0], sizes = [1, 5], strides = [1, 1]} : vector<8x5xf32> to vector<1x5xf32>
    %324 = arith.addf %315, %323 : vector<1x5xf32>
    %325 = vector.shape_cast %324 : vector<1x5xf32> to vector<1x5xf32>
    %326 = vector.broadcast %325 : vector<1x5xf32> to vector<5x5xf32>
    %327 = arith.mulf %326, %191 : vector<5x5xf32>
    %cst_66 = arith.constant dense<0.000000e+00> : vector<5xf32>
    %328 = vector.multi_reduction <add>, %327, %cst_66 [1] : vector<5x5xf32> to vector<5xf32>
    %329 = vector.shape_cast %328 : vector<5xf32> to vector<5x1xf32>
    %330 = vector.broadcast %329 : vector<5x1xf32> to vector<5x5xf32>
    %331 = arith.addf %330, %186 : vector<5x5xf32>
    %cst_67 = arith.constant dense<0xFF800000> : vector<5xf32>
    %332 = vector.multi_reduction <maximumf>, %331, %cst_67 [0] : vector<5x5xf32> to vector<5xf32>
    %333 = vector.shape_cast %332 : vector<5xf32> to vector<1x5xf32>
    %334 = vector.broadcast %333 : vector<1x5xf32> to vector<5x5xf32>
    %335 = arith.cmpf oeq, %331, %334 : vector<5x5xf32>
    %cst_68 = arith.constant 5.000000e+00 : f32
    %336 = vector.broadcast %cst_68 : f32 to vector<5x5xf32>
    %337 = arith.select %335, %192, %336 : vector<5x5xi1>, vector<5x5xf32>
    %cst_69 = arith.constant dense<0x7F800000> : vector<5xf32>
    %338 = vector.multi_reduction <minimumf>, %337, %cst_69 [0] : vector<5x5xf32> to vector<5xf32>
    %339 = vector.shape_cast %338 : vector<5xf32> to vector<1x5xf32>
    %340 = arith.fptosi %339 : vector<1x5xf32> to vector<1x5xi32>
    %341 = vector.extract_strided_slice %184 {offsets = [7, 0], sizes = [1, 5], strides = [1, 1]} : vector<8x5xf32> to vector<1x5xf32>
    %342 = arith.addf %333, %341 : vector<1x5xf32>
    %343 = tpu.concatenate %214, %232, %250, %268, %286, %304, %322, %340 in 0 : vector<1x5xi32>, vector<1x5xi32>, vector<1x5xi32>, vector<1x5xi32>, vector<1x5xi32>, vector<1x5xi32>, vector<1x5xi32>, vector<1x5xi32> -> vector<8x5xi32>
    %c0_70 = arith.constant 0 : index
    %c0_71 = arith.constant 0 : index
    %344 = vector.load %arg12[%c0_70, %c0_71] : memref<8x5xi32, #tpu.memory_space<vmem>>, vector<8x5xi32>
    tpu.vector_store %arg12[%c0_70, %c0_71], %343 {strides = array<i32>} : memref<8x5xi32, #tpu.memory_space<vmem>>, vector<8x5xi32>,
    %c0_72 = arith.constant 0 : index
    %c0_73 = arith.constant 0 : index
    %345 = vector.load %arg10[%c0_72, %c0_73] : memref<1x5xf32, #tpu.memory_space<vmem>>, vector<1x5xf32>
    %346 = arith.addf %342, %345 : vector<1x5xf32>
    %c0_74 = arith.constant 0 : index
    %c0_75 = arith.constant 0 : index
    %347 = vector.load %arg13[%c0_74, %c0_75] : memref<1x5xf32, #tpu.memory_space<vmem>>, vector<1x5xf32>
    tpu.vector_store %arg13[%c0_74, %c0_75], %346 {strides = array<i32>} : memref<1x5xf32, #tpu.memory_space<vmem>>, vector<1x5xf32>,
    return
  }
  func.func @transform_0(%arg0: i32) -> (i32, i32) {
    %c0_i32 = arith.constant 0 : i32
    %c0_i32_0 = arith.constant 0 : i32
    %c0_i32_1 = arith.constant 0 : i32
    return %c0_i32, %c0_i32_0 : i32, i32
  }
  func.func @transform_1(%arg0: i32) -> (i32, i32) {
    %c0_i32 = arith.constant 0 : i32
    %c0_i32_0 = arith.constant 0 : i32
    %c0_i32_1 = arith.constant 0 : i32
    return %c0_i32, %c0_i32_0 : i32, i32
  }
  func.func @transform_2(%arg0: i32) -> (i32, i32) {
    %c0_i32 = arith.constant 0 : i32
    %c0_i32_0 = arith.constant 0 : i32
    %c0_i32_1 = arith.constant 0 : i32
    return %c0_i32, %c0_i32_0 : i32, i32
  }
  func.func @transform_3(%arg0: i32) -> (i32, i32) {
    %c0_i32 = arith.constant 0 : i32
    %c0_i32_0 = arith.constant 0 : i32
    %c0_i32_1 = arith.constant 0 : i32
    return %c0_i32, %c0_i32_0 : i32, i32
  }
  func.func @transform_4(%arg0: i32) -> (i32, i32) {
    %c0_i32 = arith.constant 0 : i32
    %c0_i32_0 = arith.constant 0 : i32
    %c0_i32_1 = arith.constant 0 : i32
    return %c0_i32, %c0_i32_0 : i32, i32
  }
  func.func @transform_5(%arg0: i32) -> (i32, i32) {
    %c0_i32 = arith.constant 0 : i32
    %c0_i32_0 = arith.constant 0 : i32
    %c0_i32_1 = arith.constant 0 : i32
    return %c0_i32, %c0_i32_0 : i32, i32
  }
  func.func @transform_6(%arg0: i32) -> (i32, i32) {
    %c0_i32 = arith.constant 0 : i32
    %c0_i32_0 = arith.constant 0 : i32
    %c0_i32_1 = arith.constant 0 : i32
    return %c0_i32, %c0_i32_0 : i32, i32
  }
  func.func @transform_7(%arg0: i32) -> (i32, i32) {
    %c0_i32 = arith.constant 0 : i32
    %c0_i32_0 = arith.constant 0 : i32
    %c0_i32_1 = arith.constant 0 : i32
    return %c0_i32, %c0_i32_0 : i32, i32
  }
  func.func @transform_8(%arg0: i32) -> (i32, i32) {
    %c0_i32 = arith.constant 0 : i32
    %c0_i32_0 = arith.constant 0 : i32
    %c0_i32_1 = arith.constant 0 : i32
    return %c0_i32, %c0_i32_0 : i32, i32
  }
  func.func @transform_9(%arg0: i32) -> (i32, i32) {
    %c0_i32 = arith.constant 0 : i32
    %c0_i32_0 = arith.constant 0 : i32
    %c0_i32_1 = arith.constant 0 : i32
    return %c0_i32, %c0_i32_0 : i32, i32
  }
  func.func @transform_10(%arg0: i32) -> (i32, i32) {
    %c0_i32 = arith.constant 0 : i32
    %c0_i32_0 = arith.constant 0 : i32
    %c0_i32_1 = arith.constant 0 : i32
    return %c0_i32, %c0_i32_0 : i32, i32
  }
  func.func @transform_11(%arg0: i32) -> (i32, i32) {
    %c0_i32 = arith.constant 0 : i32
    %c0_i32_0 = arith.constant 0 : i32
    %c0_i32_1 = arith.constant 0 : i32
    return %c0_i32, %c0_i32_0 : i32, i32
  }
  func.func @transform_12(%arg0: i32) -> (i32, i32) {
    %c0_i32 = arith.constant 0 : i32
    %c0_i32_0 = arith.constant 0 : i32
    %c0_i32_1 = arith.constant 0 : i32
    return %c0_i32, %c0_i32_0 : i32, i32
  }
}

</mosaic_0001>

<llo_original>
// kernel: tpu_custom_call.1
$region0: #{tpu_custom_call.1}
  #allocation0 [shape = 'u32[]', space=smem, size = 0x4, offset = 0x4, fixed_abs, tag = 'smem constant byte address 0x4 - core index']
  #allocation1 [shape = 'u32[144,128]{1,0:T(1,128)}', space=vmem, size = 0x12000, scoped, tag = 'internal scratch']
  %s0 = inlined_call_operand.vmem [shape: f32[8,32], index: 0, kind: input, shape index: {}]
  %s1 = inlined_call_operand.vmem [shape: f32[32,128], index: 1, kind: input, shape index: {}]
  %s2 = inlined_call_operand.hbm [shape: f32[32,128], index: 2, kind: input, shape index: {}]
  %s3 = inlined_call_operand.vmem [shape: f32[1,128], index: 3, kind: input, shape index: {}]
  %s4 = inlined_call_operand.vmem [shape: f32[1,32], index: 4, kind: input, shape index: {}]
  %s5 = inlined_call_operand.hbm [shape: f32[1,32], index: 5, kind: input, shape index: {}]
  %s6 = inlined_call_operand.vmem [shape: f32[32,5], index: 6, kind: input, shape index: {}]
  %s7 = inlined_call_operand.vmem [shape: f32[1,5], index: 7, kind: input, shape index: {}]
  %s8 = inlined_call_operand.hbm [shape: f32[5,5], index: 8, kind: input, shape index: {}]
  %s9 = inlined_call_operand.vmem [shape: f32[1,5], index: 9, kind: input, shape index: {}]
  %s10 = inlined_call_operand.hbm [shape: f32[8,5], index: 10, kind: output, shape index: {0}]
  %s11 = inlined_call_operand.hbm [shape: s32[8,5], index: 11, kind: output, shape index: {1}]
  %s12 = inlined_call_operand.hbm [shape: f32[1,5], index: 12, kind: output, shape index: {2}]
  %13 = xla_tuple %s10, %s11, %s12
  %s14 = sld [smem:[#allocation0]]
  $region78: #{tpu_custom_call.1} parent=0
    _
  %s16 = ssub.s32 1, %s14
  %s17 = scalar_select 0, %s16, %s14
  $region1: #{tpu_custom_call.1} parent=0
    #allocation2 [shape = 'u8[16384]{0}', space=vmem, size = 0x4000, scoped, tag = 'input window, operand 2, single buffered']
    #allocation3 [shape = 's32[1]{0}', space=sflag, size = 0x4, scoped, tag = 'scoped memory for tpu_custom_call.1']
    #allocation4 [shape = 's32[1]{0}', space=sflag, size = 0x4, scoped, tag = 'scoped memory for tpu_custom_call.1']
    #allocation5 [shape = 'u8[512]{0}', space=vmem, size = 0x400, scoped, tag = 'input window, operand 5, single buffered']
    #allocation6 [shape = 's32[1]{0}', space=sflag, size = 0x4, scoped, tag = 'scoped memory for tpu_custom_call.1']
    #allocation7 [shape = 'u8[4096]{0}', space=vmem, size = 0x1000, scoped, tag = 'input window, operand 8, single buffered']
    #allocation8 [shape = 'u8[4096]{0}', space=vmem, size = 0x1000, scoped, tag = 'output window, operand 0, single buffered']
    #allocation9 [shape = 'u8[4096]{0}', space=vmem, size = 0x1000, scoped, tag = 'output window, operand 1, single buffered']
    #allocation10 [shape = 's32[1]{0}', space=sflag, size = 0x4, scoped, tag = 'scoped memory for tpu_custom_call.1']
    #allocation11 [shape = 'u8[512]{0}', space=vmem, size = 0x400, scoped, tag = 'output window, operand 2, single buffered']
    %18 = vsyncpa [#allocation3], 0
    %19 = vsyncpa [#allocation6], 0
    %20 = vsyncpa [#allocation4], 0
    %21 = vsyncpa [#allocation10], 0
    // Predicated region
    $region2: #{tpu_custom_call.1} parent=1 // pred_check
      _
    $region3: #{tpu_custom_call.1} parent=1 // pred_check_branch
      %23 = sbr.rel (0) target = $region5
    $region4: #{tpu_custom_call.1} parent=1 // pred_region
      _
    $region5: #{tpu_custom_call.1} parent=1 // pred_fallthru
      _
    // Predicated region
    $region6: #{tpu_custom_call.1} parent=1 // pred_check
      _
    $region7: #{tpu_custom_call.1} parent=1 // pred_check_branch
      %25 = sbr.rel (0) target = $region9
    $region8: #{tpu_custom_call.1} parent=1 // pred_region
      _
    $region9: #{tpu_custom_call.1} parent=1 // pred_fallthru
      _
    // Predicated region
    $region10: #{tpu_custom_call.1} parent=1 // pred_check
      _
    $region11: #{tpu_custom_call.1} parent=1 // pred_check_branch
      %27 = sbr.rel (0) target = $region13
    $region12: #{tpu_custom_call.1} parent=1 // pred_region
      %s29 = ssub.s32 512, 512
      %30 = vsyncadd [#allocation3], %s29
      %s31 = sshll.u32 [#allocation2], 4
      %s32 = int_to_ptr.vmem [resolvable:$true] %s31
      %37 = dma.hbm_to_vmem [thread:$0]  %s2, 512, %s32, [#allocation3], 128, 128, 8
    $region13: #{tpu_custom_call.1} parent=1 // pred_fallthru
      _
    // Predicated region
    $region14: #{tpu_custom_call.1} parent=1 // pred_check
      _
    $region15: #{tpu_custom_call.1} parent=1 // pred_check_branch
      %39 = sbr.rel (0) target = $region17
    $region16: #{tpu_custom_call.1} parent=1 // pred_region
      _
    $region17: #{tpu_custom_call.1} parent=1 // pred_fallthru
      _
    // Predicated region
    $region18: #{tpu_custom_call.1} parent=1 // pred_check
      _
    $region19: #{tpu_custom_call.1} parent=1 // pred_check_branch
      %41 = sbr.rel (0) target = $region21
    $region20: #{tpu_custom_call.1} parent=1 // pred_region
      _
    $region21: #{tpu_custom_call.1} parent=1 // pred_fallthru
      _
    // Predicated region
    $region22: #{tpu_custom_call.1} parent=1 // pred_check
      _
    $region23: #{tpu_custom_call.1} parent=1 // pred_check_branch
      %43 = sbr.rel (0) target = $region25
    $region24: #{tpu_custom_call.1} parent=1 // pred_region
      %s45 = ssub.s32 16, 16
      %46 = vsyncadd [#allocation6], %s45
      %s48 = sshll.u32 [#allocation5], 4
      %s49 = int_to_ptr.vmem [resolvable:$true] %s48
      %51 = dma.hbm_to_vmem [thread:$0]  %s5, 16, %s49, [#allocation6]
    $region25: #{tpu_custom_call.1} parent=1 // pred_fallthru
      _
    // Predicated region
    $region26: #{tpu_custom_call.1} parent=1 // pred_check
      _
    $region27: #{tpu_custom_call.1} parent=1 // pred_check_branch
      %53 = sbr.rel (0) target = $region29
    $region28: #{tpu_custom_call.1} parent=1 // pred_region
      _
    $region29: #{tpu_custom_call.1} parent=1 // pred_fallthru
      _
    // Predicated region
    $region30: #{tpu_custom_call.1} parent=1 // pred_check
      _
    $region31: #{tpu_custom_call.1} parent=1 // pred_check_branch
      %55 = sbr.rel (0) target = $region33
    $region32: #{tpu_custom_call.1} parent=1 // pred_region
      _
    $region33: #{tpu_custom_call.1} parent=1 // pred_fallthru
      _
    // Predicated region
    $region34: #{tpu_custom_call.1} parent=1 // pred_check
      _
    $region35: #{tpu_custom_call.1} parent=1 // pred_check_branch
      %57 = sbr.rel (0) target = $region37
    $region36: #{tpu_custom_call.1} parent=1 // pred_region
      %s59 = ssub.s32 128, 128
      %60 = vsyncadd [#allocation6], %s59
      %s62 = sshll.u32 [#allocation7], 4
      %s63 = int_to_ptr.vmem [resolvable:$true] %s62
      %65 = dma.hbm_to_vmem [thread:$0]  %s8, 128, %s63, [#allocation6]
    $region37: #{tpu_custom_call.1} parent=1 // pred_fallthru
      _
    // Predicated region
    $region38: #{tpu_custom_call.1} parent=1 // pred_check
      _
    $region39: #{tpu_custom_call.1} parent=1 // pred_check_branch
      %67 = sbr.rel (0) target = $region41
    $region40: #{tpu_custom_call.1} parent=1 // pred_region
      _
    $region41: #{tpu_custom_call.1} parent=1 // pred_fallthru
      _
    // Predicated region
    $region42: #{tpu_custom_call.1} parent=1 // pred_check
      _
    $region43: #{tpu_custom_call.1} parent=1 // pred_check_branch
      %69 = sbr.rel (0) target = $region45
    $region44: #{tpu_custom_call.1} parent=1 // pred_region
      %70 = dma.done [#allocation3], 512
    $region45: #{tpu_custom_call.1} parent=1 // pred_fallthru
      _
    // Predicated region
    $region46: #{tpu_custom_call.1} parent=1 // pred_check
      _
    $region47: #{tpu_custom_call.1} parent=1 // pred_check_branch
      %72 = sbr.rel (0) target = $region49
    $region48: #{tpu_custom_call.1} parent=1 // pred_region
      %73 = dma.done [#allocation6], 16
    $region49: #{tpu_custom_call.1} parent=1 // pred_fallthru
      _
    // Predicated region
    $region50: #{tpu_custom_call.1} parent=1 // pred_check
      _
    $region51: #{tpu_custom_call.1} parent=1 // pred_check_branch
      %75 = sbr.rel (0) target = $region53
    $region52: #{tpu_custom_call.1} parent=1 // pred_region
      %76 = dma.done [#allocation6], 128
    $region53: #{tpu_custom_call.1} parent=1 // pred_fallthru
      _
    %v77 = vld [vmem:[%s0] sm:$0xff]
    %v78 = vld [vmem:[%s1] sm:$0xff]
    %v79 = vld [vmem:[%s1 + $0x8] sm:$0xff]
    %v80 = vld [vmem:[%s1 + $0x10] sm:$0xff]
    %v81 = vld [vmem:[%s1 + $0x18] sm:$0xff]
    %v82 = vld [vmem:[%s3] sm:$0x1]
    %v84 = vlaneseq
    %v85 = vshrl.u32 %v84, 7
    %v86 = vsub.s32 0, %v85
    %v87 = vrot.slane %v82, %v86
    %vm89 = vcmask 261120
    %v91 = vsel %vm89, %v77, 0
    %93 = vmatprep.subr.mxu0 0.0
    %94 = vmatpush1.msra.mxu0 0.0
    %95 = vmatprep.subr.mxu0 0.0
    %96 = vmatpush1.msra.mxu0 0.0
    %97 = vmatprep.subr.mxu0 0.0
    %98 = vmatpush1.msra.mxu0 0.0
    %99 = vmatprep.subr.mxu0 0.0
    %100 = vmatpush1.msra.mxu0 0.0
    %101 = vmatprep.subr.mxu0 0.0
    %102 = vmatpush1.msra.mxu0 0.0
    %103 = vmatprep.subr.mxu0 0.0
    %104 = vmatpush1.msra.mxu0 0.0
    %105 = vmatprep.subr.mxu0 0.0
    %106 = vmatpush1.msra.mxu0 0.0
    %107 = vmatprep.subr.mxu0 0.0
    %108 = vmatpush1.msra.mxu0 0.0
    %109 = vmatprep.subr.mxu0 0.0
    %110 = vmatpush1.msra.mxu0 0.0
    %111 = vmatprep.subr.mxu0 0.0
    %112 = vmatpush1.msra.mxu0 0.0
    %113 = vmatprep.subr.mxu0 0.0
    %114 = vmatpush1.msra.mxu0 0.0
    %115 = vmatprep.subr.mxu0 0.0
    %116 = vmatpush1.msra.mxu0 0.0
    %117 = vmatprep.subr.mxu0 0.0
    %118 = vmatpush1.msra.mxu0 %v81
    %119 = vmatprep.subr.mxu0 0.0
    %120 = vmatpush1.msra.mxu0 %v80
    %121 = vmatprep.subr.mxu0 0.0
    %122 = vmatpush1.msra.mxu0 %v79
    %123 = vmatprep.subr.mxu0 0.0
    %124 = vmatpush1.msra.mxu0 %v78
    %125 = vmatprep.subr.mxu0 0.0
    %126 = vmatpush2.msra.mxu0 0.0
    %127 = vmatprep.subr.mxu0 0.0
    %128 = vmatpush2.msra.mxu0 0.0
    %129 = vmatprep.subr.mxu0 0.0
    %130 = vmatpush2.msra.mxu0 0.0
    %131 = vmatprep.subr.mxu0 0.0
    %132 = vmatpush2.msra.mxu0 0.0
    %133 = vmatprep.subr.mxu0 0.0
    %134 = vmatpush2.msra.mxu0 0.0
    %135 = vmatprep.subr.mxu0 0.0
    %136 = vmatpush2.msra.mxu0 0.0
    %137 = vmatprep.subr.mxu0 0.0
    %138 = vmatpush2.msra.mxu0 0.0
    %139 = vmatprep.subr.mxu0 0.0
    %140 = vmatpush2.msra.mxu0 0.0
    %141 = vmatprep.subr.mxu0 0.0
    %142 = vmatpush2.msra.mxu0 0.0
    %143 = vmatprep.subr.mxu0 0.0
    %144 = vmatpush2.msra.mxu0 0.0
    %145 = vmatprep.subr.mxu0 0.0
    %146 = vmatpush2.msra.mxu0 0.0
    %147 = vmatprep.subr.mxu0 0.0
    %148 = vmatpush2.msra.mxu0 0.0
    %149 = vmatprep.subr.mxu0 0.0
    %150 = vmatpush2.msra.mxu0 0.0
    %151 = vmatprep.subr.mxu0 0.0
    %152 = vmatpush2.msra.mxu0 0.0
    %153 = vmatprep.subr.mxu0 0.0
    %154 = vmatpush2.msra.mxu0 0.0
    %155 = vmatprep.subr.mxu0 0.0
    %156 = vmatpush2.msra.mxu0 0.0
    %157 = vmatprep.mubr.f32.mxu0 0.0
    %158 = vmatmul.mubr.f32.gmra.mxu0 %v91
    %v159 = vpop.f32.mrf.mxu0
    %v160 = vadd.f32 %v87, %v159
    %v161 = vpop.f32.mrf.mxu0
    %162 = vdwg.mxu0
    %v163 = vld [vmem:[#allocation2] sm:$0xff]
    %v164 = vld [vmem:[#allocation2 + $0x8] sm:$0xff]
    %v165 = vld [vmem:[#allocation2 + $0x10] sm:$0xff]
    %v166 = vld [vmem:[#allocation2 + $0x18] sm:$0xff]
    %v167 = vld [vmem:[%s4] sm:$0x1]
    %v168 = vld [vmem:[#allocation5] sm:$0x1]
    %v170 = vsel %vm89, %v167, 0
    %172 = vmatprep.subr.mxu0 0.0
    %173 = vmatpush1.msra.mxu0 0.0
    %174 = vmatprep.subr.mxu0 0.0
    %175 = vmatpush1.msra.mxu0 0.0
    %176 = vmatprep.subr.mxu0 0.0
    %177 = vmatpush1.msra.mxu0 0.0
    %178 = vmatprep.subr.mxu0 0.0
    %179 = vmatpush1.msra.mxu0 0.0
    %180 = vmatprep.subr.mxu0 0.0
    %181 = vmatpush1.msra.mxu0 0.0
    %182 = vmatprep.subr.mxu0 0.0
    %183 = vmatpush1.msra.mxu0 0.0
    %184 = vmatprep.subr.mxu0 0.0
    %185 = vmatpush1.msra.mxu0 0.0
    %186 = vmatprep.subr.mxu0 0.0
    %187 = vmatpush1.msra.mxu0 0.0
    %188 = vmatprep.subr.mxu0 0.0
    %189 = vmatpush1.msra.mxu0 0.0
    %190 = vmatprep.subr.mxu0 0.0
    %191 = vmatpush1.msra.mxu0 0.0
    %192 = vmatprep.subr.mxu0 0.0
    %193 = vmatpush1.msra.mxu0 0.0
    %194 = vmatprep.subr.mxu0 0.0
    %195 = vmatpush1.msra.mxu0 0.0
    %196 = vmatprep.subr.mxu0 0.0
    %197 = vmatpush1.msra.mxu0 %v166
    %198 = vmatprep.subr.mxu0 0.0
    %199 = vmatpush1.msra.mxu0 %v165
    %200 = vmatprep.subr.mxu0 0.0
    %201 = vmatpush1.msra.mxu0 %v164
    %202 = vmatprep.subr.mxu0 0.0
    %203 = vmatpush1.msra.mxu0 %v163
    %204 = vmatprep.subr.mxu0 0.0
    %205 = vmatpush2.msra.mxu0 0.0
    %206 = vmatprep.subr.mxu0 0.0
    %207 = vmatpush2.msra.mxu0 0.0
    %208 = vmatprep.subr.mxu0 0.0
    %209 = vmatpush2.msra.mxu0 0.0
    %210 = vmatprep.subr.mxu0 0.0
    %211 = vmatpush2.msra.mxu0 0.0
    %212 = vmatprep.subr.mxu0 0.0
    %213 = vmatpush2.msra.mxu0 0.0
    %214 = vmatprep.subr.mxu0 0.0
    %215 = vmatpush2.msra.mxu0 0.0
    %216 = vmatprep.subr.mxu0 0.0
    %217 = vmatpush2.msra.mxu0 0.0
    %218 = vmatprep.subr.mxu0 0.0
    %219 = vmatpush2.msra.mxu0 0.0
    %220 = vmatprep.subr.mxu0 0.0
    %221 = vmatpush2.msra.mxu0 0.0
    %222 = vmatprep.subr.mxu0 0.0
    %223 = vmatpush2.msra.mxu0 0.0
    %224 = vmatprep.subr.mxu0 0.0
    %225 = vmatpush2.msra.mxu0 0.0
    %226 = vmatprep.subr.mxu0 0.0
    %227 = vmatpush2.msra.mxu0 0.0
    %228 = vmatprep.subr.mxu0 0.0
    %229 = vmatpush2.msra.mxu0 0.0
    %230 = vmatprep.subr.mxu0 0.0
    %231 = vmatpush2.msra.mxu0 0.0
    %232 = vmatprep.subr.mxu0 0.0
    %233 = vmatpush2.msra.mxu0 0.0
    %234 = vmatprep.subr.mxu0 0.0
    %235 = vmatpush2.msra.mxu0 0.0
    %236 = vmatprep.mubr.f32.mxu0 0.0
    %237 = vmatmul.mubr.f32.gmra.mxu0 %v170
    %v238 = vpop.f32.mrf.mxu0
    %v239 = vadd.f32 0.0, %v238
    %v240 = vpop.f32.mrf.mxu0
    %241 = vdwg.mxu0
    %v242 = vadd.f32 %v160, %v239
    %v243 = vxor.u32 %v242, 2147483648
    %v244 = vmul.f32 %v243, 1.442695
    %v245 = vpow.pop %v244
    %v246 = vadd.f32 %v245, 1.0
    %v247 = vrcp.pop %v246
    %v248 = vmul.f32 1.0, %v247
    %v249 = vtanh.pop %v242
    %v251 = vlaneseq
    %v252 = vshrl.u32 %v251, 7
    %v253 = vsub.s32 0, %v252
    %v254 = vrot.slane %v168, %v253
    %255 = vrot.lane.b32.xlu0 %v254, 32
    %v256 = vpop.permute.xlu0 %255
    %v258 = vmul.f32 %v248, %v256
    %260 = vrot.lane.b32.xlu0 %v249, 32
    %v261 = vpop.permute.xlu0 %260
    %v263 = vmul.f32 %v248, %v261
    %265 = vrot.lane.b32.xlu0 %v263, 32
    %v266 = vpop.permute.xlu0 %265
    %v268 = vadd.f32 %v258, %v266
    %v269 = vtanh.pop %v268
    %271 = vrot.lane.b32.xlu0 %v269, 32
    %v272 = vpop.permute.xlu0 %271
    %v274 = vmul.f32 %v248, %v272
    %276 = vrot.lane.b32.xlu0 %v274, 64
    %v277 = vpop.permute.xlu0 %276
    %v278 = vsel %vm89, %v277, 0
    %280 = vmatprep.subr.mxu0 0.0
    %281 = vmatpush1.msra.mxu0 0.0
    %282 = vmatprep.subr.mxu0 0.0
    %283 = vmatpush1.msra.mxu0 0.0
    %284 = vmatprep.subr.mxu0 0.0
    %285 = vmatpush1.msra.mxu0 0.0
    %286 = vmatprep.subr.mxu0 0.0
    %287 = vmatpush1.msra.mxu0 0.0
    %288 = vmatprep.subr.mxu0 0.0
    %289 = vmatpush1.msra.mxu0 0.0
    %290 = vmatprep.subr.mxu0 0.0
    %291 = vmatpush1.msra.mxu0 0.0
    %292 = vmatprep.subr.mxu0 0.0
    %293 = vmatpush1.msra.mxu0 0.0
    %294 = vmatprep.subr.mxu0 0.0
    %295 = vmatpush1.msra.mxu0 0.0
    %296 = vmatprep.subr.mxu0 0.0
    %297 = vmatpush1.msra.mxu0 0.0
    %298 = vmatprep.subr.mxu0 0.0
    %299 = vmatpush1.msra.mxu0 0.0
    %300 = vmatprep.subr.mxu0 0.0
    %301 = vmatpush1.msra.mxu0 0.0
    %302 = vmatprep.subr.mxu0 0.0
    %303 = vmatpush1.msra.mxu0 0.0
    %304 = vmatprep.subr.mxu0 0.0
    %305 = vmatpush1.msra.mxu0 %v166
    %306 = vmatprep.subr.mxu0 0.0
    %307 = vmatpush1.msra.mxu0 %v165
    %308 = vmatprep.subr.mxu0 0.0
    %309 = vmatpush1.msra.mxu0 %v164
    %310 = vmatprep.subr.mxu0 0.0
    %311 = vmatpush1.msra.mxu0 %v163
    %312 = vmatprep.subr.mxu0 0.0
    %313 = vmatpush2.msra.mxu0 0.0
    %314 = vmatprep.subr.mxu0 0.0
    %315 = vmatpush2.msra.mxu0 0.0
    %316 = vmatprep.subr.mxu0 0.0
    %317 = vmatpush2.msra.mxu0 0.0
    %318 = vmatprep.subr.mxu0 0.0
    %319 = vmatpush2.msra.mxu0 0.0
    %320 = vmatprep.subr.mxu0 0.0
    %321 = vmatpush2.msra.mxu0 0.0
    %322 = vmatprep.subr.mxu0 0.0
    %323 = vmatpush2.msra.mxu0 0.0
    %324 = vmatprep.subr.mxu0 0.0
    %325 = vmatpush2.msra.mxu0 0.0
    %326 = vmatprep.subr.mxu0 0.0
    %327 = vmatpush2.msra.mxu0 0.0
    %328 = vmatprep.subr.mxu0 0.0
    %329 = vmatpush2.msra.mxu0 0.0
    %330 = vmatprep.subr.mxu0 0.0
    %331 = vmatpush2.msra.mxu0 0.0
    %332 = vmatprep.subr.mxu0 0.0
    %333 = vmatpush2.msra.mxu0 0.0
    %334 = vmatprep.subr.mxu0 0.0
    %335 = vmatpush2.msra.mxu0 0.0
    %336 = vmatprep.subr.mxu0 0.0
    %337 = vmatpush2.msra.mxu0 0.0
    %338 = vmatprep.subr.mxu0 0.0
    %339 = vmatpush2.msra.mxu0 0.0
    %340 = vmatprep.subr.mxu0 0.0
    %341 = vmatpush2.msra.mxu0 0.0
    %342 = vmatprep.subr.mxu0 0.0
    %343 = vmatpush2.msra.mxu0 0.0
    %344 = vmatprep.mubr.f32.mxu0 0.0
    %345 = vmatmul.mubr.f32.gmra.mxu0 %v278
    %v346 = vpop.f32.mrf.mxu0
    %v347 = vadd.f32 0.0, %v346
    %v348 = vpop.f32.mrf.mxu0
    %349 = vdwg.mxu0
    %v351 = vrot.slane %v347, 7
    %v353 = vadd.f32 %v160, %v351
    %v354 = vxor.u32 %v353, 2147483648
    %v355 = vmul.f32 %v354, 1.442695
    %v356 = vpow.pop %v355
    %v357 = vadd.f32 %v356, 1.0
    %v358 = vrcp.pop %v357
    %v359 = vmul.f32 1.0, %v358
    %v360 = vtanh.pop %v353
    %v362 = vrot.slane %v268, 7
    %v364 = vmul.f32 %v359, %v362
    %366 = vrot.lane.b32.xlu0 %v360, 32
    %v367 = vpop.permute.xlu0 %366
    %v369 = vmul.f32 %v359, %v367
    %371 = vrot.lane.b32.xlu0 %v369, 32
    %v372 = vpop.permute.xlu0 %371
    %v374 = vadd.f32 %v364, %v372
    %v375 = vtanh.pop %v374
    %377 = vrot.lane.b32.xlu0 %v375, 32
    %v378 = vpop.permute.xlu0 %377
    %v380 = vmul.f32 %v359, %v378
    %v382 = vrot.slane %v380, 1
    %383 = vrot.lane.b32.xlu0 %v382, 64
    %v384 = vpop.permute.xlu0 %383
    %v385 = vsel %vm89, %v384, 0
    %387 = vmatprep.subr.mxu0 0.0
    %388 = vmatpush1.msra.mxu0 0.0
    %389 = vmatprep.subr.mxu0 0.0
    %390 = vmatpush1.msra.mxu0 0.0
    %391 = vmatprep.subr.mxu0 0.0
    %392 = vmatpush1.msra.mxu0 0.0
    %393 = vmatprep.subr.mxu0 0.0
    %394 = vmatpush1.msra.mxu0 0.0
    %395 = vmatprep.subr.mxu0 0.0
    %396 = vmatpush1.msra.mxu0 0.0
    %397 = vmatprep.subr.mxu0 0.0
    %398 = vmatpush1.msra.mxu0 0.0
    %399 = vmatprep.subr.mxu0 0.0
    %400 = vmatpush1.msra.mxu0 0.0
    %401 = vmatprep.subr.mxu0 0.0
    %402 = vmatpush1.msra.mxu0 0.0
    %403 = vmatprep.subr.mxu0 0.0
    %404 = vmatpush1.msra.mxu0 0.0
    %405 = vmatprep.subr.mxu0 0.0
    %406 = vmatpush1.msra.mxu0 0.0
    %407 = vmatprep.subr.mxu0 0.0
    %408 = vmatpush1.msra.mxu0 0.0
    %409 = vmatprep.subr.mxu0 0.0
    %410 = vmatpush1.msra.mxu0 0.0
    %411 = vmatprep.subr.mxu0 0.0
    %412 = vmatpush1.msra.mxu0 %v166
    %413 = vmatprep.subr.mxu0 0.0
    %414 = vmatpush1.msra.mxu0 %v165
    %415 = vmatprep.subr.mxu0 0.0
    %416 = vmatpush1.msra.mxu0 %v164
    %417 = vmatprep.subr.mxu0 0.0
    %418 = vmatpush1.msra.mxu0 %v163
    %419 = vmatprep.subr.mxu0 0.0
    %420 = vmatpush2.msra.mxu0 0.0
    %421 = vmatprep.subr.mxu0 0.0
    %422 = vmatpush2.msra.mxu0 0.0
    %423 = vmatprep.subr.mxu0 0.0
    %424 = vmatpush2.msra.mxu0 0.0
    %425 = vmatprep.subr.mxu0 0.0
    %426 = vmatpush2.msra.mxu0 0.0
    %427 = vmatprep.subr.mxu0 0.0
    %428 = vmatpush2.msra.mxu0 0.0
    %429 = vmatprep.subr.mxu0 0.0
    %430 = vmatpush2.msra.mxu0 0.0
    %431 = vmatprep.subr.mxu0 0.0
    %432 = vmatpush2.msra.mxu0 0.0
    %433 = vmatprep.subr.mxu0 0.0
    %434 = vmatpush2.msra.mxu0 0.0
    %435 = vmatprep.subr.mxu0 0.0
    %436 = vmatpush2.msra.mxu0 0.0
    %437 = vmatprep.subr.mxu0 0.0
    %438 = vmatpush2.msra.mxu0 0.0
    %439 = vmatprep.subr.mxu0 0.0
    %440 = vmatpush2.msra.mxu0 0.0
    %441 = vmatprep.subr.mxu0 0.0
    %442 = vmatpush2.msra.mxu0 0.0
    %443 = vmatprep.subr.mxu0 0.0
    %444 = vmatpush2.msra.mxu0 0.0
    %445 = vmatprep.subr.mxu0 0.0
    %446 = vmatpush2.msra.mxu0 0.0
    %447 = vmatprep.subr.mxu0 0.0
    %448 = vmatpush2.msra.mxu0 0.0
    %449 = vmatprep.subr.mxu0 0.0
    %450 = vmatpush2.msra.mxu0 0.0
    %451 = vmatprep.mubr.f32.mxu0 0.0
    %452 = vmatmul.mubr.f32.gmra.mxu0 %v385
    %v453 = vpop.f32.mrf.mxu0
    %v454 = vadd.f32 0.0, %v453
    %v455 = vpop.f32.mrf.mxu0
    %456 = vdwg.mxu0
    %v458 = vrot.slane %v454, 6
    %v460 = vadd.f32 %v160, %v458
    %v461 = vxor.u32 %v460, 2147483648
    %v462 = vmul.f32 %v461, 1.442695
    %v463 = vpow.pop %v462
    %v464 = vadd.f32 %v463, 1.0
    %v465 = vrcp.pop %v464
    %v466 = vmul.f32 1.0, %v465
    %v467 = vtanh.pop %v460
    %v469 = vrot.slane %v374, 7
    %v471 = vmul.f32 %v466, %v469
    %473 = vrot.lane.b32.xlu0 %v467, 32
    %v474 = vpop.permute.xlu0 %473
    %v476 = vmul.f32 %v466, %v474
    %478 = vrot.lane.b32.xlu0 %v476, 32
    %v479 = vpop.permute.xlu0 %478
    %v481 = vadd.f32 %v471, %v479
    %v482 = vtanh.pop %v481
    %484 = vrot.lane.b32.xlu0 %v482, 32
    %v485 = vpop.permute.xlu0 %484
    %v487 = vmul.f32 %v466, %v485
    %v489 = vrot.slane %v487, 2
    %490 = vrot.lane.b32.xlu0 %v489, 64
    %v491 = vpop.permute.xlu0 %490
    %v492 = vsel %vm89, %v491, 0
    %494 = vmatprep.subr.mxu0 0.0
    %495 = vmatpush1.msra.mxu0 0.0
    %496 = vmatprep.subr.mxu0 0.0
    %497 = vmatpush1.msra.mxu0 0.0
    %498 = vmatprep.subr.mxu0 0.0
    %499 = vmatpush1.msra.mxu0 0.0
    %500 = vmatprep.subr.mxu0 0.0
    %501 = vmatpush1.msra.mxu0 0.0
    %502 = vmatprep.subr.mxu0 0.0
    %503 = vmatpush1.msra.mxu0 0.0
    %504 = vmatprep.subr.mxu0 0.0
    %505 = vmatpush1.msra.mxu0 0.0
    %506 = vmatprep.subr.mxu0 0.0
    %507 = vmatpush1.msra.mxu0 0.0
    %508 = vmatprep.subr.mxu0 0.0
    %509 = vmatpush1.msra.mxu0 0.0
    %510 = vmatprep.subr.mxu0 0.0
    %511 = vmatpush1.msra.mxu0 0.0
    %512 = vmatprep.subr.mxu0 0.0
    %513 = vmatpush1.msra.mxu0 0.0
    %514 = vmatprep.subr.mxu0 0.0
    %515 = vmatpush1.msra.mxu0 0.0
    %516 = vmatprep.subr.mxu0 0.0
    %517 = vmatpush1.msra.mxu0 0.0
    %518 = vmatprep.subr.mxu0 0.0
    %519 = vmatpush1.msra.mxu0 %v166
    %520 = vmatprep.subr.mxu0 0.0
    %521 = vmatpush1.msra.mxu0 %v165
    %522 = vmatprep.subr.mxu0 0.0
    %523 = vmatpush1.msra.mxu0 %v164
    %524 = vmatprep.subr.mxu0 0.0
    %525 = vmatpush1.msra.mxu0 %v163
    %526 = vmatprep.subr.mxu0 0.0
    %527 = vmatpush2.msra.mxu0 0.0
    %528 = vmatprep.subr.mxu0 0.0
    %529 = vmatpush2.msra.mxu0 0.0
    %530 = vmatprep.subr.mxu0 0.0
    %531 = vmatpush2.msra.mxu0 0.0
    %532 = vmatprep.subr.mxu0 0.0
    %533 = vmatpush2.msra.mxu0 0.0
    %534 = vmatprep.subr.mxu0 0.0
    %535 = vmatpush2.msra.mxu0 0.0
    %536 = vmatprep.subr.mxu0 0.0
    %537 = vmatpush2.msra.mxu0 0.0
    %538 = vmatprep.subr.mxu0 0.0
    %539 = vmatpush2.msra.mxu0 0.0
    %540 = vmatprep.subr.mxu0 0.0
    %541 = vmatpush2.msra.mxu0 0.0
    %542 = vmatprep.subr.mxu0 0.0
    %543 = vmatpush2.msra.mxu0 0.0
    %544 = vmatprep.subr.mxu0 0.0
    %545 = vmatpush2.msra.mxu0 0.0
    %546 = vmatprep.subr.mxu0 0.0
    %547 = vmatpush2.msra.mxu0 0.0
    %548 = vmatprep.subr.mxu0 0.0
    %549 = vmatpush2.msra.mxu0 0.0
    %550 = vmatprep.subr.mxu0 0.0
    %551 = vmatpush2.msra.mxu0 0.0
    %552 = vmatprep.subr.mxu0 0.0
    %553 = vmatpush2.msra.mxu0 0.0
    %554 = vmatprep.subr.mxu0 0.0
    %555 = vmatpush2.msra.mxu0 0.0
    %556 = vmatprep.subr.mxu0 0.0
    %557 = vmatpush2.msra.mxu0 0.0
    %558 = vmatprep.mubr.f32.mxu0 0.0
    %559 = vmatmul.mubr.f32.gmra.mxu0 %v492
    %v560 = vpop.f32.mrf.mxu0
    %v561 = vadd.f32 0.0, %v560
    %v562 = vpop.f32.mrf.mxu0
    %563 = vdwg.mxu0
    %v565 = vrot.slane %v561, 5
    %v567 = vadd.f32 %v160, %v565
    %v568 = vxor.u32 %v567, 2147483648
    %v569 = vmul.f32 %v568, 1.442695
    %v570 = vpow.pop %v569
    %v571 = vadd.f32 %v570, 1.0
    %v572 = vrcp.pop %v571
    %v573 = vmul.f32 1.0, %v572
    %v574 = vtanh.pop %v567
    %v576 = vrot.slane %v481, 7
    %v578 = vmul.f32 %v573, %v576
    %580 = vrot.lane.b32.xlu0 %v574, 32
    %v581 = vpop.permute.xlu0 %580
    %v583 = vmul.f32 %v573, %v581
    %585 = vrot.lane.b32.xlu0 %v583, 32
    %v586 = vpop.permute.xlu0 %585
    %v588 = vadd.f32 %v578, %v586
    %v589 = vtanh.pop %v588
    %591 = vrot.lane.b32.xlu0 %v589, 32
    %v592 = vpop.permute.xlu0 %591
    %v594 = vmul.f32 %v573, %v592
    %v596 = vrot.slane %v594, 3
    %597 = vrot.lane.b32.xlu0 %v596, 64
    %v598 = vpop.permute.xlu0 %597
    %v599 = vsel %vm89, %v598, 0
    %601 = vmatprep.subr.mxu0 0.0
    %602 = vmatpush1.msra.mxu0 0.0
    %603 = vmatprep.subr.mxu0 0.0
    %604 = vmatpush1.msra.mxu0 0.0
    %605 = vmatprep.subr.mxu0 0.0
    %606 = vmatpush1.msra.mxu0 0.0
    %607 = vmatprep.subr.mxu0 0.0
    %608 = vmatpush1.msra.mxu0 0.0
    %609 = vmatprep.subr.mxu0 0.0
    %610 = vmatpush1.msra.mxu0 0.0
    %611 = vmatprep.subr.mxu0 0.0
    %612 = vmatpush1.msra.mxu0 0.0
    %613 = vmatprep.subr.mxu0 0.0
    %614 = vmatpush1.msra.mxu0 0.0
    %615 = vmatprep.subr.mxu0 0.0
    %616 = vmatpush1.msra.mxu0 0.0
    %617 = vmatprep.subr.mxu0 0.0
    %618 = vmatpush1.msra.mxu0 0.0
    %619 = vmatprep.subr.mxu0 0.0
    %620 = vmatpush1.msra.mxu0 0.0
    %621 = vmatprep.subr.mxu0 0.0
    %622 = vmatpush1.msra.mxu0 0.0
    %623 = vmatprep.subr.mxu0 0.0
    %624 = vmatpush1.msra.mxu0 0.0
    %625 = vmatprep.subr.mxu0 0.0
    %626 = vmatpush1.msra.mxu0 %v166
    %627 = vmatprep.subr.mxu0 0.0
    %628 = vmatpush1.msra.mxu0 %v165
    %629 = vmatprep.subr.mxu0 0.0
    %630 = vmatpush1.msra.mxu0 %v164
    %631 = vmatprep.subr.mxu0 0.0
    %632 = vmatpush1.msra.mxu0 %v163
    %633 = vmatprep.subr.mxu0 0.0
    %634 = vmatpush2.msra.mxu0 0.0
    %635 = vmatprep.subr.mxu0 0.0
    %636 = vmatpush2.msra.mxu0 0.0
    %637 = vmatprep.subr.mxu0 0.0
    %638 = vmatpush2.msra.mxu0 0.0
    %639 = vmatprep.subr.mxu0 0.0
    %640 = vmatpush2.msra.mxu0 0.0
    %641 = vmatprep.subr.mxu0 0.0
    %642 = vmatpush2.msra.mxu0 0.0
    %643 = vmatprep.subr.mxu0 0.0
    %644 = vmatpush2.msra.mxu0 0.0
    %645 = vmatprep.subr.mxu0 0.0
    %646 = vmatpush2.msra.mxu0 0.0
    %647 = vmatprep.subr.mxu0 0.0
    %648 = vmatpush2.msra.mxu0 0.0
    %649 = vmatprep.subr.mxu0 0.0
    %650 = vmatpush2.msra.mxu0 0.0
    %651 = vmatprep.subr.mxu0 0.0
    %652 = vmatpush2.msra.mxu0 0.0
    %653 = vmatprep.subr.mxu0 0.0
    %654 = vmatpush2.msra.mxu0 0.0
    %655 = vmatprep.subr.mxu0 0.0
    %656 = vmatpush2.msra.mxu0 0.0
    %657 = vmatprep.subr.mxu0 0.0
    %658 = vmatpush2.msra.mxu0 0.0
    %659 = vmatprep.subr.mxu0 0.0
    %660 = vmatpush2.msra.mxu0 0.0
    %661 = vmatprep.subr.mxu0 0.0
    %662 = vmatpush2.msra.mxu0 0.0
    %663 = vmatprep.subr.mxu0 0.0
    %664 = vmatpush2.msra.mxu0 0.0
    %665 = vmatprep.mubr.f32.mxu0 0.0
    %666 = vmatmul.mubr.f32.gmra.mxu0 %v599
    %v667 = vpop.f32.mrf.mxu0
    %v668 = vadd.f32 0.0, %v667
    %v669 = vpop.f32.mrf.mxu0
    %670 = vdwg.mxu0
    %v672 = vrot.slane %v668, 4
    %v674 = vadd.f32 %v160, %v672
    %v675 = vxor.u32 %v674, 2147483648
    %v676 = vmul.f32 %v675, 1.442695
    %v677 = vpow.pop %v676
    %v678 = vadd.f32 %v677, 1.0
    %v679 = vrcp.pop %v678
    %v680 = vmul.f32 1.0, %v679
    %v681 = vtanh.pop %v674
    %v683 = vrot.slane %v588, 7
    %v685 = vmul.f32 %v680, %v683
    %687 = vrot.lane.b32.xlu0 %v681, 32
    %v688 = vpop.permute.xlu0 %687
    %v690 = vmul.f32 %v680, %v688
    %692 = vrot.lane.b32.xlu0 %v690, 32
    %v693 = vpop.permute.xlu0 %692
    %v695 = vadd.f32 %v685, %v693
    %v696 = vtanh.pop %v695
    %698 = vrot.lane.b32.xlu0 %v696, 32
    %v699 = vpop.permute.xlu0 %698
    %v701 = vmul.f32 %v680, %v699
    %v703 = vrot.slane %v701, 4
    %704 = vrot.lane.b32.xlu0 %v703, 64
    %v705 = vpop.permute.xlu0 %704
    %v706 = vsel %vm89, %v705, 0
    %708 = vmatprep.subr.mxu0 0.0
    %709 = vmatpush1.msra.mxu0 0.0
    %710 = vmatprep.subr.mxu0 0.0
    %711 = vmatpush1.msra.mxu0 0.0
    %712 = vmatprep.subr.mxu0 0.0
    %713 = vmatpush1.msra.mxu0 0.0
    %714 = vmatprep.subr.mxu0 0.0
    %715 = vmatpush1.msra.mxu0 0.0
    %716 = vmatprep.subr.mxu0 0.0
    %717 = vmatpush1.msra.mxu0 0.0
    %718 = vmatprep.subr.mxu0 0.0
    %719 = vmatpush1.msra.mxu0 0.0
    %720 = vmatprep.subr.mxu0 0.0
    %721 = vmatpush1.msra.mxu0 0.0
    %722 = vmatprep.subr.mxu0 0.0
    %723 = vmatpush1.msra.mxu0 0.0
    %724 = vmatprep.subr.mxu0 0.0
    %725 = vmatpush1.msra.mxu0 0.0
    %726 = vmatprep.subr.mxu0 0.0
    %727 = vmatpush1.msra.mxu0 0.0
    %728 = vmatprep.subr.mxu0 0.0
    %729 = vmatpush1.msra.mxu0 0.0
    %730 = vmatprep.subr.mxu0 0.0
    %731 = vmatpush1.msra.mxu0 0.0
    %732 = vmatprep.subr.mxu0 0.0
    %733 = vmatpush1.msra.mxu0 %v166
    %734 = vmatprep.subr.mxu0 0.0
    %735 = vmatpush1.msra.mxu0 %v165
    %736 = vmatprep.subr.mxu0 0.0
    %737 = vmatpush1.msra.mxu0 %v164
    %738 = vmatprep.subr.mxu0 0.0
    %739 = vmatpush1.msra.mxu0 %v163
    %740 = vmatprep.subr.mxu0 0.0
    %741 = vmatpush2.msra.mxu0 0.0
    %742 = vmatprep.subr.mxu0 0.0
    %743 = vmatpush2.msra.mxu0 0.0
    %744 = vmatprep.subr.mxu0 0.0
    %745 = vmatpush2.msra.mxu0 0.0
    %746 = vmatprep.subr.mxu0 0.0
    %747 = vmatpush2.msra.mxu0 0.0
    %748 = vmatprep.subr.mxu0 0.0
    %749 = vmatpush2.msra.mxu0 0.0
    %750 = vmatprep.subr.mxu0 0.0
    %751 = vmatpush2.msra.mxu0 0.0
    %752 = vmatprep.subr.mxu0 0.0
    %753 = vmatpush2.msra.mxu0 0.0
    %754 = vmatprep.subr.mxu0 0.0
    %755 = vmatpush2.msra.mxu0 0.0
    %756 = vmatprep.subr.mxu0 0.0
    %757 = vmatpush2.msra.mxu0 0.0
    %758 = vmatprep.subr.mxu0 0.0
    %759 = vmatpush2.msra.mxu0 0.0
    %760 = vmatprep.subr.mxu0 0.0
    %761 = vmatpush2.msra.mxu0 0.0
    %762 = vmatprep.subr.mxu0 0.0
    %763 = vmatpush2.msra.mxu0 0.0
    %764 = vmatprep.subr.mxu0 0.0
    %765 = vmatpush2.msra.mxu0 0.0
    %766 = vmatprep.subr.mxu0 0.0
    %767 = vmatpush2.msra.mxu0 0.0
    %768 = vmatprep.subr.mxu0 0.0
    %769 = vmatpush2.msra.mxu0 0.0
    %770 = vmatprep.subr.mxu0 0.0
    %771 = vmatpush2.msra.mxu0 0.0
    %772 = vmatprep.mubr.f32.mxu0 0.0
    %773 = vmatmul.mubr.f32.gmra.mxu0 %v706
    %v774 = vpop.f32.mrf.mxu0
    %v775 = vadd.f32 0.0, %v774
    %v776 = vpop.f32.mrf.mxu0
    %777 = vdwg.mxu0
    %v779 = vrot.slane %v775, 3
    %v781 = vadd.f32 %v160, %v779
    %v782 = vxor.u32 %v781, 2147483648
    %v783 = vmul.f32 %v782, 1.442695
    %v784 = vpow.pop %v783
    %v785 = vadd.f32 %v784, 1.0
    %v786 = vrcp.pop %v785
    %v787 = vmul.f32 1.0, %v786
    %v788 = vtanh.pop %v781
    %v790 = vrot.slane %v695, 7
    %v792 = vmul.f32 %v787, %v790
    %794 = vrot.lane.b32.xlu0 %v788, 32
    %v795 = vpop.permute.xlu0 %794
    %v797 = vmul.f32 %v787, %v795
    %799 = vrot.lane.b32.xlu0 %v797, 32
    %v800 = vpop.permute.xlu0 %799
    %v802 = vadd.f32 %v792, %v800
    %v803 = vtanh.pop %v802
    %805 = vrot.lane.b32.xlu0 %v803, 32
    %v806 = vpop.permute.xlu0 %805
    %v808 = vmul.f32 %v787, %v806
    %v810 = vrot.slane %v808, 5
    %811 = vrot.lane.b32.xlu0 %v810, 64
    %v812 = vpop.permute.xlu0 %811
    %v813 = vsel %vm89, %v812, 0
    %815 = vmatprep.subr.mxu0 0.0
    %816 = vmatpush1.msra.mxu0 0.0
    %817 = vmatprep.subr.mxu0 0.0
    %818 = vmatpush1.msra.mxu0 0.0
    %819 = vmatprep.subr.mxu0 0.0
    %820 = vmatpush1.msra.mxu0 0.0
    %821 = vmatprep.subr.mxu0 0.0
    %822 = vmatpush1.msra.mxu0 0.0
    %823 = vmatprep.subr.mxu0 0.0
    %824 = vmatpush1.msra.mxu0 0.0
    %825 = vmatprep.subr.mxu0 0.0
    %826 = vmatpush1.msra.mxu0 0.0
    %827 = vmatprep.subr.mxu0 0.0
    %828 = vmatpush1.msra.mxu0 0.0
    %829 = vmatprep.subr.mxu0 0.0
    %830 = vmatpush1.msra.mxu0 0.0
    %831 = vmatprep.subr.mxu0 0.0
    %832 = vmatpush1.msra.mxu0 0.0
    %833 = vmatprep.subr.mxu0 0.0
    %834 = vmatpush1.msra.mxu0 0.0
    %835 = vmatprep.subr.mxu0 0.0
    %836 = vmatpush1.msra.mxu0 0.0
    %837 = vmatprep.subr.mxu0 0.0
    %838 = vmatpush1.msra.mxu0 0.0
    %839 = vmatprep.subr.mxu0 0.0
    %840 = vmatpush1.msra.mxu0 %v166
    %841 = vmatprep.subr.mxu0 0.0
    %842 = vmatpush1.msra.mxu0 %v165
    %843 = vmatprep.subr.mxu0 0.0
    %844 = vmatpush1.msra.mxu0 %v164
    %845 = vmatprep.subr.mxu0 0.0
    %846 = vmatpush1.msra.mxu0 %v163
    %847 = vmatprep.subr.mxu0 0.0
    %848 = vmatpush2.msra.mxu0 0.0
    %849 = vmatprep.subr.mxu0 0.0
    %850 = vmatpush2.msra.mxu0 0.0
    %851 = vmatprep.subr.mxu0 0.0
    %852 = vmatpush2.msra.mxu0 0.0
    %853 = vmatprep.subr.mxu0 0.0
    %854 = vmatpush2.msra.mxu0 0.0
    %855 = vmatprep.subr.mxu0 0.0
    %856 = vmatpush2.msra.mxu0 0.0
    %857 = vmatprep.subr.mxu0 0.0
    %858 = vmatpush2.msra.mxu0 0.0
    %859 = vmatprep.subr.mxu0 0.0
    %860 = vmatpush2.msra.mxu0 0.0
    %861 = vmatprep.subr.mxu0 0.0
    %862 = vmatpush2.msra.mxu0 0.0
    %863 = vmatprep.subr.mxu0 0.0
    %864 = vmatpush2.msra.mxu0 0.0
    %865 = vmatprep.subr.mxu0 0.0
    %866 = vmatpush2.msra.mxu0 0.0
    %867 = vmatprep.subr.mxu0 0.0
    %868 = vmatpush2.msra.mxu0 0.0
    %869 = vmatprep.subr.mxu0 0.0
    %870 = vmatpush2.msra.mxu0 0.0
    %871 = vmatprep.subr.mxu0 0.0
    %872 = vmatpush2.msra.mxu0 0.0
    %873 = vmatprep.subr.mxu0 0.0
    %874 = vmatpush2.msra.mxu0 0.0
    %875 = vmatprep.subr.mxu0 0.0
    %876 = vmatpush2.msra.mxu0 0.0
    %877 = vmatprep.subr.mxu0 0.0
    %878 = vmatpush2.msra.mxu0 0.0
    %879 = vmatprep.mubr.f32.mxu0 0.0
    %880 = vmatmul.mubr.f32.gmra.mxu0 %v813
    %v881 = vpop.f32.mrf.mxu0
    %v882 = vadd.f32 0.0, %v881
    %v883 = vpop.f32.mrf.mxu0
    %884 = vdwg.mxu0
    %v886 = vrot.slane %v882, 2
    %v888 = vadd.f32 %v160, %v886
    %v889 = vxor.u32 %v888, 2147483648
    %v890 = vmul.f32 %v889, 1.442695
    %v891 = vpow.pop %v890
    %v892 = vadd.f32 %v891, 1.0
    %v893 = vrcp.pop %v892
    %v894 = vmul.f32 1.0, %v893
    %v895 = vtanh.pop %v888
    %v897 = vrot.slane %v802, 7
    %v899 = vmul.f32 %v894, %v897
    %901 = vrot.lane.b32.xlu0 %v895, 32
    %v902 = vpop.permute.xlu0 %901
    %v904 = vmul.f32 %v894, %v902
    %906 = vrot.lane.b32.xlu0 %v904, 32
    %v907 = vpop.permute.xlu0 %906
    %v909 = vadd.f32 %v899, %v907
    %v910 = vtanh.pop %v909
    %912 = vrot.lane.b32.xlu0 %v910, 32
    %v913 = vpop.permute.xlu0 %912
    %v915 = vmul.f32 %v894, %v913
    %v917 = vrot.slane %v915, 6
    %918 = vrot.lane.b32.xlu0 %v917, 64
    %v919 = vpop.permute.xlu0 %918
    %v920 = vsel %vm89, %v919, 0
    %922 = vmatprep.subr.mxu0 0.0
    %923 = vmatpush1.msra.mxu0 0.0
    %924 = vmatprep.subr.mxu0 0.0
    %925 = vmatpush1.msra.mxu0 0.0
    %926 = vmatprep.subr.mxu0 0.0
    %927 = vmatpush1.msra.mxu0 0.0
    %928 = vmatprep.subr.mxu0 0.0
    %929 = vmatpush1.msra.mxu0 0.0
    %930 = vmatprep.subr.mxu0 0.0
    %931 = vmatpush1.msra.mxu0 0.0
    %932 = vmatprep.subr.mxu0 0.0
    %933 = vmatpush1.msra.mxu0 0.0
    %934 = vmatprep.subr.mxu0 0.0
    %935 = vmatpush1.msra.mxu0 0.0
    %936 = vmatprep.subr.mxu0 0.0
    %937 = vmatpush1.msra.mxu0 0.0
    %938 = vmatprep.subr.mxu0 0.0
    %939 = vmatpush1.msra.mxu0 0.0
    %940 = vmatprep.subr.mxu0 0.0
    %941 = vmatpush1.msra.mxu0 0.0
    %942 = vmatprep.subr.mxu0 0.0
    %943 = vmatpush1.msra.mxu0 0.0
    %944 = vmatprep.subr.mxu0 0.0
    %945 = vmatpush1.msra.mxu0 0.0
    %946 = vmatprep.subr.mxu0 0.0
    %947 = vmatpush1.msra.mxu0 %v166
    %948 = vmatprep.subr.mxu0 0.0
    %949 = vmatpush1.msra.mxu0 %v165
    %950 = vmatprep.subr.mxu0 0.0
    %951 = vmatpush1.msra.mxu0 %v164
    %952 = vmatprep.subr.mxu0 0.0
    %953 = vmatpush1.msra.mxu0 %v163
    %954 = vmatprep.subr.mxu0 0.0
    %955 = vmatpush2.msra.mxu0 0.0
    %956 = vmatprep.subr.mxu0 0.0
    %957 = vmatpush2.msra.mxu0 0.0
    %958 = vmatprep.subr.mxu0 0.0
    %959 = vmatpush2.msra.mxu0 0.0
    %960 = vmatprep.subr.mxu0 0.0
    %961 = vmatpush2.msra.mxu0 0.0
    %962 = vmatprep.subr.mxu0 0.0
    %963 = vmatpush2.msra.mxu0 0.0
    %964 = vmatprep.subr.mxu0 0.0
    %965 = vmatpush2.msra.mxu0 0.0
    %966 = vmatprep.subr.mxu0 0.0
    %967 = vmatpush2.msra.mxu0 0.0
    %968 = vmatprep.subr.mxu0 0.0
    %969 = vmatpush2.msra.mxu0 0.0
    %970 = vmatprep.subr.mxu0 0.0
    %971 = vmatpush2.msra.mxu0 0.0
    %972 = vmatprep.subr.mxu0 0.0
    %973 = vmatpush2.msra.mxu0 0.0
    %974 = vmatprep.subr.mxu0 0.0
    %975 = vmatpush2.msra.mxu0 0.0
    %976 = vmatprep.subr.mxu0 0.0
    %977 = vmatpush2.msra.mxu0 0.0
    %978 = vmatprep.subr.mxu0 0.0
    %979 = vmatpush2.msra.mxu0 0.0
    %980 = vmatprep.subr.mxu0 0.0
    %981 = vmatpush2.msra.mxu0 0.0
    %982 = vmatprep.subr.mxu0 0.0
    %983 = vmatpush2.msra.mxu0 0.0
    %984 = vmatprep.subr.mxu0 0.0
    %985 = vmatpush2.msra.mxu0 0.0
    %986 = vmatprep.mubr.f32.mxu0 0.0
    %987 = vmatmul.mubr.f32.gmra.mxu0 %v920
    %v988 = vpop.f32.mrf.mxu0
    %v989 = vadd.f32 0.0, %v988
    %v990 = vpop.f32.mrf.mxu0
    %991 = vdwg.mxu0
    %v993 = vrot.slane %v989, 1
    %v995 = vadd.f32 %v160, %v993
    %v996 = vxor.u32 %v995, 2147483648
    %v997 = vmul.f32 %v996, 1.442695
    %v998 = vpow.pop %v997
    %v999 = vadd.f32 %v998, 1.0
    %v1000 = vrcp.pop %v999
    %v1001 = vmul.f32 1.0, %v1000
    %v1002 = vtanh.pop %v995
    %v1004 = vrot.slane %v909, 7
    %v1006 = vmul.f32 %v1001, %v1004
    %1008 = vrot.lane.b32.xlu0 %v1002, 32
    %v1009 = vpop.permute.xlu0 %1008
    %v1011 = vmul.f32 %v1001, %v1009
    %1013 = vrot.lane.b32.xlu0 %v1011, 32
    %v1014 = vpop.permute.xlu0 %1013
    %v1016 = vadd.f32 %v1006, %v1014
    %v1017 = vtanh.pop %v1016
    %1019 = vrot.lane.b32.xlu0 %v1017, 32
    %v1020 = vpop.permute.xlu0 %1019
    %v1022 = vmul.f32 %v1001, %v1020
    %vm1023 = vcmask 1040384
    %v1024 = vsel %vm1023, %v274, %v380
    %vm1025 = vcmask 1041408
    %v1026 = vsel %vm1025, %v1024, %v487
    %vm1027 = vcmask 1042432
    %v1028 = vsel %vm1027, %v1026, %v594
    %vm1029 = vcmask 1043456
    %v1030 = vsel %vm1029, %v1028, %v701
    %vm1031 = vcmask 1044480
    %v1032 = vsel %vm1031, %v1030, %v808
    %vm1033 = vcmask 1045504
    %v1034 = vsel %vm1033, %v1032, %v915
    %vm1035 = vcmask 1046528
    %v1036 = vsel %vm1035, %v1034, %v1022
    %v1038 = vrot.slane %v1022, 7
    %v1040 = vrot.slane %v915, 5
    %v1042 = vrot.slane %v808, 3
    %v1044 = vrot.slane %v701, 1
    %v1046 = vrot.slane %v594, 7
    %v1048 = vrot.slane %v487, 5
    %v1050 = vrot.slane %v380, 3
    %v1052 = vrot.slane %v274, 1
    %v1054 = vsel %vm1023, %v1038, %v1040
    %v1055 = vsel %vm1025, %v1054, %v1042
    %v1056 = vsel %vm1027, %v1055, %v1044
    %v1057 = vsel %vm1029, %v1056, %v1046
    %v1058 = vsel %vm1031, %v1057, %v1048
    %v1059 = vsel %vm1033, %v1058, %v1050
    %v1060 = vsel %vm1035, %v1059, %v1052
    %1062 = vrot.lane.b32.xlu0 %v1036, 64
    %v1063 = vpop.permute.xlu0 %1062
    %1066 = vrot.lane.b32.xlu0 %v1060, 64
    %v1067 = vpop.permute.xlu0 %1066
    %vm1069 = vcmask 130048
    %v1070 = vsel %vm1069, %v1063, %v1067
    %v1071 = vld [vmem:[%s6] sm:$0xff]
    %v1072 = vld [vmem:[%s6 + $0x8] sm:$0xff]
    %v1073 = vld [vmem:[%s6 + $0x10] sm:$0xff]
    %v1074 = vld [vmem:[%s6 + $0x18] sm:$0xff]
    %v1075 = vld [vmem:[%s7] sm:$0x1]
    %v1077 = vlaneseq
    %v1078 = vshrl.u32 %v1077, 7
    %v1079 = vsub.s32 0, %v1078
    %v1080 = vrot.slane %v1075, %v1079
    %v1083 = vsel %vm89, %v1070, 0
    %1085 = vmatprep.subr.mxu0 0.0
    %1086 = vmatpush1.msra.mxu0 0.0
    %1087 = vmatprep.subr.mxu0 0.0
    %1088 = vmatpush1.msra.mxu0 0.0
    %1089 = vmatprep.subr.mxu0 0.0
    %1090 = vmatpush1.msra.mxu0 0.0
    %1091 = vmatprep.subr.mxu0 0.0
    %1092 = vmatpush1.msra.mxu0 0.0
    %1093 = vmatprep.subr.mxu0 0.0
    %1094 = vmatpush1.msra.mxu0 0.0
    %1095 = vmatprep.subr.mxu0 0.0
    %1096 = vmatpush1.msra.mxu0 0.0
    %1097 = vmatprep.subr.mxu0 0.0
    %1098 = vmatpush1.msra.mxu0 0.0
    %1099 = vmatprep.subr.mxu0 0.0
    %1100 = vmatpush1.msra.mxu0 0.0
    %1101 = vmatprep.subr.mxu0 0.0
    %1102 = vmatpush1.msra.mxu0 0.0
    %1103 = vmatprep.subr.mxu0 0.0
    %1104 = vmatpush1.msra.mxu0 0.0
    %1105 = vmatprep.subr.mxu0 0.0
    %1106 = vmatpush1.msra.mxu0 0.0
    %1107 = vmatprep.subr.mxu0 0.0
    %1108 = vmatpush1.msra.mxu0 0.0
    %1109 = vmatprep.subr.mxu0 0.0
    %1110 = vmatpush1.msra.mxu0 %v1074
    %1111 = vmatprep.subr.mxu0 0.0
    %1112 = vmatpush1.msra.mxu0 %v1073
    %1113 = vmatprep.subr.mxu0 0.0
    %1114 = vmatpush1.msra.mxu0 %v1072
    %1115 = vmatprep.subr.mxu0 0.0
    %1116 = vmatpush1.msra.mxu0 %v1071
    %1117 = vmatprep.subr.mxu0 0.0
    %1118 = vmatpush2.msra.mxu0 0.0
    %1119 = vmatprep.subr.mxu0 0.0
    %1120 = vmatpush2.msra.mxu0 0.0
    %1121 = vmatprep.subr.mxu0 0.0
    %1122 = vmatpush2.msra.mxu0 0.0
    %1123 = vmatprep.subr.mxu0 0.0
    %1124 = vmatpush2.msra.mxu0 0.0
    %1125 = vmatprep.subr.mxu0 0.0
    %1126 = vmatpush2.msra.mxu0 0.0
    %1127 = vmatprep.subr.mxu0 0.0
    %1128 = vmatpush2.msra.mxu0 0.0
    %1129 = vmatprep.subr.mxu0 0.0
    %1130 = vmatpush2.msra.mxu0 0.0
    %1131 = vmatprep.subr.mxu0 0.0
    %1132 = vmatpush2.msra.mxu0 0.0
    %1133 = vmatprep.subr.mxu0 0.0
    %1134 = vmatpush2.msra.mxu0 0.0
    %1135 = vmatprep.subr.mxu0 0.0
    %1136 = vmatpush2.msra.mxu0 0.0
    %1137 = vmatprep.subr.mxu0 0.0
    %1138 = vmatpush2.msra.mxu0 0.0
    %1139 = vmatprep.subr.mxu0 0.0
    %1140 = vmatpush2.msra.mxu0 0.0
    %1141 = vmatprep.subr.mxu0 0.0
    %1142 = vmatpush2.msra.mxu0 0.0
    %1143 = vmatprep.subr.mxu0 0.0
    %1144 = vmatpush2.msra.mxu0 0.0
    %1145 = vmatprep.subr.mxu0 0.0
    %1146 = vmatpush2.msra.mxu0 0.0
    %1147 = vmatprep.subr.mxu0 0.0
    %1148 = vmatpush2.msra.mxu0 0.0
    %1149 = vmatprep.mubr.f32.mxu0 0.0
    %1150 = vmatmul.mubr.f32.gmra.mxu0 %v1083
    %v1151 = vpop.f32.mrf.mxu0
    %v1152 = vadd.f32 %v1080, %v1151
    %v1153 = vpop.f32.mrf.mxu0
    %1154 = vdwg.mxu0
    %vm1155 = vcmask 39936
    %1156 = vst.msk [vmem:[#allocation8] sm:$0xff] %vm1155, %v1152
    %v1157 = vld [vmem:[#allocation7] sm:$0x1f]
    %v1158 = vlaneseq
    %v1159 = vshrl.u32 %v1158, 7
    %v1160 = vlaneseq
    %v1161 = vand.u32 %v1160, 127
    %vm1162 = vcmp.eq.s32.totalorder %v1159, %v1161
    %v1163 = vsel %vm1162, 1, 0
    %v1164 = vcvt.s32.f32 %v1163
    %v1165 = vcvt.s32.f32 %v1159
    %vm1166 = vcmp.eq.s32.totalorder %v1161, 3
    %v1167 = vsel %vm1166, 0.0, -10000.0
    %v1168 = vmul.f32 %v1167, %v1164
    %vm1169 = vcmask 36864
    %v1170 = vsel %vm1169, %v1168, 0.0
    %1171 = vadd.xlane.f32.xlu0 %v1170
    %v1172 = vpop.xlane.xlu0 %1171
    %v1173 = vadd.f32 %v1172, %v1157
    %v1174 = vsel %vm1169, %v1173, -inf
    %v1175 = vrot.slane %v1174, 4
    %v1176 = vmax.f32 %v1174, %v1175
    %v1177 = vrot.slane %v1176, 2
    %v1178 = vmax.f32 %v1176, %v1177
    %v1179 = vrot.slane %v1178, 1
    %v1180 = vmax.f32 %v1178, %v1179
    %vm1181 = vcmp.eq.f32.partialorder %v1173, %v1180
    %v1182 = vsel %vm1181, %v1165, 5.0
    %v1183 = vsel %vm1169, %v1182, inf
    %v1184 = vrot.slane %v1183, 4
    %v1185 = vmin.f32 %v1183, %v1184
    %v1186 = vrot.slane %v1185, 2
    %v1187 = vmin.f32 %v1185, %v1186
    %v1188 = vrot.slane %v1187, 1
    %v1189 = vmin.f32 %v1187, %v1188
    %v1190 = vcvt.f32.s32.to.zero.pseudo %v1189
    %v1191 = vadd.f32 %v1180, %v1152
    %v1192 = vlaneseq
    %v1193 = vshrl.u32 %v1192, 7
    %v1194 = vsub.s32 0, %v1193
    %v1195 = vrot.slane %v1191, %v1194
    %v1196 = vmul.f32 %v1195, %v1164
    %v1197 = vsel %vm1169, %v1196, 0.0
    %1198 = vadd.xlane.f32.xlu0 %v1197
    %v1199 = vpop.xlane.xlu0 %1198
    %v1200 = vadd.f32 %v1199, %v1157
    %v1201 = vsel %vm1169, %v1200, -inf
    %v1202 = vrot.slane %v1201, 4
    %v1203 = vmax.f32 %v1201, %v1202
    %v1204 = vrot.slane %v1203, 2
    %v1205 = vmax.f32 %v1203, %v1204
    %v1206 = vrot.slane %v1205, 1
    %v1207 = vmax.f32 %v1205, %v1206
    %vm1208 = vcmp.eq.f32.partialorder %v1200, %v1207
    %v1209 = vsel %vm1208, %v1165, 5.0
    %v1210 = vsel %vm1169, %v1209, inf
    %v1211 = vrot.slane %v1210, 4
    %v1212 = vmin.f32 %v1210, %v1211
    %v1213 = vrot.slane %v1212, 2
    %v1214 = vmin.f32 %v1212, %v1213
    %v1215 = vrot.slane %v1214, 1
    %v1216 = vmin.f32 %v1214, %v1215
    %v1217 = vcvt.f32.s32.to.zero.pseudo %v1216
    %v1218 = vadd.f32 %v1207, %v1152
    %v1219 = vlaneseq
    %v1220 = vshrl.u32 %v1219, 7
    %v1221 = vsub.s32 1, %v1220
    %v1222 = vrot.slane %v1218, %v1221
    %v1223 = vmul.f32 %v1222, %v1164
    %v1224 = vsel %vm1169, %v1223, 0.0
    %1225 = vadd.xlane.f32.xlu0 %v1224
    %v1226 = vpop.xlane.xlu0 %1225
    %v1227 = vadd.f32 %v1226, %v1157
    %v1228 = vsel %vm1169, %v1227, -inf
    %v1229 = vrot.slane %v1228, 4
    %v1230 = vmax.f32 %v1228, %v1229
    %v1231 = vrot.slane %v1230, 2
    %v1232 = vmax.f32 %v1230, %v1231
    %v1233 = vrot.slane %v1232, 1
    %v1234 = vmax.f32 %v1232, %v1233
    %vm1235 = vcmp.eq.f32.partialorder %v1227, %v1234
    %v1236 = vsel %vm1235, %v1165, 5.0
    %v1237 = vsel %vm1169, %v1236, inf
    %v1238 = vrot.slane %v1237, 4
    %v1239 = vmin.f32 %v1237, %v1238
    %v1240 = vrot.slane %v1239, 2
    %v1241 = vmin.f32 %v1239, %v1240
    %v1242 = vrot.slane %v1241, 1
    %v1243 = vmin.f32 %v1241, %v1242
    %v1244 = vcvt.f32.s32.to.zero.pseudo %v1243
    %v1245 = vadd.f32 %v1234, %v1152
    %v1246 = vlaneseq
    %v1247 = vshrl.u32 %v1246, 7
    %v1248 = vsub.s32 2, %v1247
    %v1249 = vrot.slane %v1245, %v1248
    %v1250 = vmul.f32 %v1249, %v1164
    %v1251 = vsel %vm1169, %v1250, 0.0
    %1252 = vadd.xlane.f32.xlu0 %v1251
    %v1253 = vpop.xlane.xlu0 %1252
    %v1254 = vadd.f32 %v1253, %v1157
    %v1255 = vsel %vm1169, %v1254, -inf
    %v1256 = vrot.slane %v1255, 4
    %v1257 = vmax.f32 %v1255, %v1256
    %v1258 = vrot.slane %v1257, 2
    %v1259 = vmax.f32 %v1257, %v1258
    %v1260 = vrot.slane %v1259, 1
    %v1261 = vmax.f32 %v1259, %v1260
    %vm1262 = vcmp.eq.f32.partialorder %v1254, %v1261
    %v1263 = vsel %vm1262, %v1165, 5.0
    %v1264 = vsel %vm1169, %v1263, inf
    %v1265 = vrot.slane %v1264, 4
    %v1266 = vmin.f32 %v1264, %v1265
    %v1267 = vrot.slane %v1266, 2
    %v1268 = vmin.f32 %v1266, %v1267
    %v1269 = vrot.slane %v1268, 1
    %v1270 = vmin.f32 %v1268, %v1269
    %v1271 = vcvt.f32.s32.to.zero.pseudo %v1270
    %v1272 = vadd.f32 %v1261, %v1152
    %v1273 = vlaneseq
    %v1274 = vshrl.u32 %v1273, 7
    %v1275 = vsub.s32 3, %v1274
    %v1276 = vrot.slane %v1272, %v1275
    %v1277 = vmul.f32 %v1276, %v1164
    %v1278 = vsel %vm1169, %v1277, 0.0
    %1279 = vadd.xlane.f32.xlu0 %v1278
    %v1280 = vpop.xlane.xlu0 %1279
    %v1281 = vadd.f32 %v1280, %v1157
    %v1282 = vsel %vm1169, %v1281, -inf
    %v1283 = vrot.slane %v1282, 4
    %v1284 = vmax.f32 %v1282, %v1283
    %v1285 = vrot.slane %v1284, 2
    %v1286 = vmax.f32 %v1284, %v1285
    %v1287 = vrot.slane %v1286, 1
    %v1288 = vmax.f32 %v1286, %v1287
    %vm1289 = vcmp.eq.f32.partialorder %v1281, %v1288
    %v1290 = vsel %vm1289, %v1165, 5.0
    %v1291 = vsel %vm1169, %v1290, inf
    %v1292 = vrot.slane %v1291, 4
    %v1293 = vmin.f32 %v1291, %v1292
    %v1294 = vrot.slane %v1293, 2
    %v1295 = vmin.f32 %v1293, %v1294
    %v1296 = vrot.slane %v1295, 1
    %v1297 = vmin.f32 %v1295, %v1296
    %v1298 = vcvt.f32.s32.to.zero.pseudo %v1297
    %v1299 = vadd.f32 %v1288, %v1152
    %v1300 = vlaneseq
    %v1301 = vshrl.u32 %v1300, 7
    %v1302 = vsub.s32 4, %v1301
    %v1303 = vrot.slane %v1299, %v1302
    %v1304 = vmul.f32 %v1303, %v1164
    %v1305 = vsel %vm1169, %v1304, 0.0
    %1306 = vadd.xlane.f32.xlu0 %v1305
    %v1307 = vpop.xlane.xlu0 %1306
    %v1308 = vadd.f32 %v1307, %v1157
    %v1309 = vsel %vm1169, %v1308, -inf
    %v1310 = vrot.slane %v1309, 4
    %v1311 = vmax.f32 %v1309, %v1310
    %v1312 = vrot.slane %v1311, 2
    %v1313 = vmax.f32 %v1311, %v1312
    %v1314 = vrot.slane %v1313, 1
    %v1315 = vmax.f32 %v1313, %v1314
    %vm1316 = vcmp.eq.f32.partialorder %v1308, %v1315
    %v1317 = vsel %vm1316, %v1165, 5.0
    %v1318 = vsel %vm1169, %v1317, inf
    %v1319 = vrot.slane %v1318, 4
    %v1320 = vmin.f32 %v1318, %v1319
    %v1321 = vrot.slane %v1320, 2
    %v1322 = vmin.f32 %v1320, %v1321
    %v1323 = vrot.slane %v1322, 1
    %v1324 = vmin.f32 %v1322, %v1323
    %v1325 = vcvt.f32.s32.to.zero.pseudo %v1324
    %v1326 = vadd.f32 %v1315, %v1152
    %v1327 = vlaneseq
    %v1328 = vshrl.u32 %v1327, 7
    %v1329 = vsub.s32 5, %v1328
    %v1330 = vrot.slane %v1326, %v1329
    %v1331 = vmul.f32 %v1330, %v1164
    %v1332 = vsel %vm1169, %v1331, 0.0
    %1333 = vadd.xlane.f32.xlu0 %v1332
    %v1334 = vpop.xlane.xlu0 %1333
    %v1335 = vadd.f32 %v1334, %v1157
    %v1336 = vsel %vm1169, %v1335, -inf
    %v1337 = vrot.slane %v1336, 4
    %v1338 = vmax.f32 %v1336, %v1337
    %v1339 = vrot.slane %v1338, 2
    %v1340 = vmax.f32 %v1338, %v1339
    %v1341 = vrot.slane %v1340, 1
    %v1342 = vmax.f32 %v1340, %v1341
    %vm1343 = vcmp.eq.f32.partialorder %v1335, %v1342
    %v1344 = vsel %vm1343, %v1165, 5.0
    %v1345 = vsel %vm1169, %v1344, inf
    %v1346 = vrot.slane %v1345, 4
    %v1347 = vmin.f32 %v1345, %v1346
    %v1348 = vrot.slane %v1347, 2
    %v1349 = vmin.f32 %v1347, %v1348
    %v1350 = vrot.slane %v1349, 1
    %v1351 = vmin.f32 %v1349, %v1350
    %v1352 = vcvt.f32.s32.to.zero.pseudo %v1351
    %v1353 = vadd.f32 %v1342, %v1152
    %v1354 = vlaneseq
    %v1355 = vshrl.u32 %v1354, 7
    %v1356 = vsub.s32 6, %v1355
    %v1357 = vrot.slane %v1353, %v1356
    %v1358 = vmul.f32 %v1357, %v1164
    %v1359 = vsel %vm1169, %v1358, 0.0
    %1360 = vadd.xlane.f32.xlu0 %v1359
    %v1361 = vpop.xlane.xlu0 %1360
    %v1362 = vadd.f32 %v1361, %v1157
    %v1363 = vsel %vm1169, %v1362, -inf
    %v1364 = vrot.slane %v1363, 4
    %v1365 = vmax.f32 %v1363, %v1364
    %v1366 = vrot.slane %v1365, 2
    %v1367 = vmax.f32 %v1365, %v1366
    %v1368 = vrot.slane %v1367, 1
    %v1369 = vmax.f32 %v1367, %v1368
    %vm1370 = vcmp.eq.f32.partialorder %v1362, %v1369
    %v1371 = vsel %vm1370, %v1165, 5.0
    %v1372 = vsel %vm1169, %v1371, inf
    %v1373 = vrot.slane %v1372, 4
    %v1374 = vmin.f32 %v1372, %v1373
    %v1375 = vrot.slane %v1374, 2
    %v1376 = vmin.f32 %v1374, %v1375
    %v1377 = vrot.slane %v1376, 1
    %v1378 = vmin.f32 %v1376, %v1377
    %v1379 = vcvt.f32.s32.to.zero.pseudo %v1378
    %v1380 = vadd.f32 %v1369, %v1152
    %v1381 = vsel %vm1023, %v1190, %v1217
    %v1382 = vsel %vm1025, %v1381, %v1244
    %v1383 = vsel %vm1027, %v1382, %v1271
    %v1384 = vsel %vm1029, %v1383, %v1298
    %v1385 = vsel %vm1031, %v1384, %v1325
    %v1386 = vsel %vm1033, %v1385, %v1352
    %v1387 = vsel %vm1035, %v1386, %v1379
    %1388 = vst.msk [vmem:[#allocation9] sm:$0xff] %vm1155, %v1387
    %v1389 = vld [vmem:[%s9] sm:$0x1]
    %v1391 = vlaneseq
    %v1392 = vshrl.u32 %v1391, 7
    %v1393 = vsub.s32 0, %v1392
    %v1394 = vrot.slane %v1389, %v1393
    %v1396 = vadd.f32 %v1380, %v1394
    %vm1397 = vcmask 39943
    %1398 = vst.msk [vmem:[#allocation11 - $0x7] sm:$0x80] %vm1397, %v1396
    // Predicated region
    $region54: #{tpu_custom_call.1} parent=1 // pred_check
      _
    $region55: #{tpu_custom_call.1} parent=1 // pred_check_branch
      %1400 = sbr.rel (0) target = $region57
    $region56: #{tpu_custom_call.1} parent=1 // pred_region
      %s1402 = ssub.s32 128, 128
      %1403 = vsyncadd [#allocation4], %s1402
      %s1405 = sshll.u32 [#allocation8], 4
      %s1406 = int_to_ptr.vmem [resolvable:$true] %s1405
      %1408 = dma.vmem_to_hbm [thread:$0]  %s1406, 128, %s10, [#allocation4]
    $region57: #{tpu_custom_call.1} parent=1 // pred_fallthru
      _
    // Predicated region
    $region58: #{tpu_custom_call.1} parent=1 // pred_check
      _
    $region59: #{tpu_custom_call.1} parent=1 // pred_check_branch
      %1410 = sbr.rel (0) target = $region61
    $region60: #{tpu_custom_call.1} parent=1 // pred_region
      %s1412 = ssub.s32 128, 128
      %1413 = vsyncadd [#allocation10], %s1412
      %s1415 = sshll.u32 [#allocation9], 4
      %s1416 = int_to_ptr.vmem [resolvable:$true] %s1415
      %1418 = dma.vmem_to_hbm [thread:$0]  %s1416, 128, %s11, [#allocation10]
    $region61: #{tpu_custom_call.1} parent=1 // pred_fallthru
      _
    // Predicated region
    $region62: #{tpu_custom_call.1} parent=1 // pred_check
      _
    $region63: #{tpu_custom_call.1} parent=1 // pred_check_branch
      %1420 = sbr.rel (0) target = $region65
    $region64: #{tpu_custom_call.1} parent=1 // pred_region
      %s1422 = ssub.s32 16, 16
      %1423 = vsyncadd [#allocation10], %s1422
      %s1425 = sshll.u32 [#allocation11], 4
      %s1426 = int_to_ptr.vmem [resolvable:$true] %s1425
      %1428 = dma.vmem_to_hbm [thread:$0]  %s1426, 16, %s12, [#allocation10]
    $region65: #{tpu_custom_call.1} parent=1 // pred_fallthru
      _
    // Predicated region
    $region66: #{tpu_custom_call.1} parent=1 // pred_check
      _
    $region67: #{tpu_custom_call.1} parent=1 // pred_check_branch
      %1430 = sbr.rel (0) target = $region69
    $region68: #{tpu_custom_call.1} parent=1 // pred_region
      %1431 = dma.done [#allocation4], 128
    $region69: #{tpu_custom_call.1} parent=1 // pred_fallthru
      _
    // Predicated region
    $region70: #{tpu_custom_call.1} parent=1 // pred_check
      _
    $region71: #{tpu_custom_call.1} parent=1 // pred_check_branch
      %1433 = sbr.rel (0) target = $region73
    $region72: #{tpu_custom_call.1} parent=1 // pred_region
      %1434 = dma.done [#allocation10], 128
    $region73: #{tpu_custom_call.1} parent=1 // pred_fallthru
      _
    // Predicated region
    $region74: #{tpu_custom_call.1} parent=1 // pred_check
      _
    $region75: #{tpu_custom_call.1} parent=1 // pred_check_branch
      %1436 = sbr.rel (0) target = $region77
    $region76: #{tpu_custom_call.1} parent=1 // pred_region
      %1437 = dma.done [#allocation10], 16
    $region77: #{tpu_custom_call.1} parent=1 // pred_fallthru
      _
    %1438 = vsyncpa [#allocation3], 1
    %1439 = vsyncpa [#allocation6], 1
    %1440 = vsyncpa [#allocation4], 1
    %1441 = vsyncpa [#allocation10], 1

</llo_original>
